<compile_context>
chip_gen: v7x
topology: tpu7x:2x2x1
jax: 0.10.0
libtpu: 0.0.40
codegen_flags: <defaults>
</compile_context>

<pallas_src>
from functools import partial

import jax
import jax.numpy as jnp
from jax.experimental import pallas as pl
from jax.experimental.pallas import tpu as pltpu


def mha_kernel(pd_ref, x_ref, xq_ref, w1_ref, b1_ref, w2_ref, b2_ref,
               wv_ref, bv_ref, wp_ref, bp_ref, o_ref, pdw_ref, mask_ref,
               *, T, TQ, C, H, HS):
    """One (query-tile, batch) grid step; all heads + output proj fused.

    pd_ref : (TQ*T, 2C)  pos_dist rows of this query tile (flattened (i,j))
    x_ref  : (1, T, C)   key/value rows        xq_ref : (1, TQ, C) query rows
    w1_ref : (2C, H*C)   att layer-1, all heads          b1_ref : (1, H*C)
    w2_ref : (H*C, H)    att layer-2 block-diag (C**-0.5 and GELU 0.5 folded)
    b2_ref : (1, H)      (C**-0.5 folded)
    wv_ref : (C, E)      value weights, all heads        bv_ref : (1, E)
    wp_ref : (E, E_pad)  output projection (zero-padded lane-dense)
    bp_ref : (1, E_pad)
    o_ref  : (1, TQ, E_pad)
    pdw_ref: (TQ, T, H*C)  scratch: batch-invariant pd@W1 + b1 cache
    mask_ref: (TQ, T)      scratch: batch-invariant additive causal mask (f32)
    """
    HC = H * C
    qi = pl.program_id(0)

    # ---- batch-invariant work, computed once per query tile ----------------
    # Batch is the inner, sequential ("arbitrary") grid axis, so the scratch
    # stays valid for every b of this q.  Do NOT reorder the grid or make the
    # batch axis parallel without revisiting this cache.
    @pl.when(pl.program_id(1) == 0)
    def _():
        pdw = jnp.dot(pd_ref[...], w1_ref[...],
                      preferred_element_type=jnp.float32)              # (TQ*T, HC)
        pdw = (pdw + b1_ref[...]).reshape(TQ, T, HC)
        pdw_ref[...] = pdw.astype(pdw_ref.dtype)
        row = qi * TQ + jax.lax.broadcasted_iota(jnp.int32, (TQ, T), 0)
        col = jax.lax.broadcasted_iota(jnp.int32, (TQ, T), 1)
        mask_ref[...] = jnp.where(col <= row, 0.0, -jnp.inf).astype(jnp.float32)

    x = x_ref[0]                       # (T, C)   key / value rows (bf16)
    xq_rows = xq_ref[0]                # (TQ, C)  query rows of this tile
    w1 = w1_ref[...]                   # (2C, HC)

    # cat(k, q) @ W1 == k @ W1[:C] + q @ W1[C:]  (the (T,T,2C) concat is never
    # materialized); wide over all heads, bf16 operands, f32 accumulation.
    xk = jnp.dot(x, w1[:C, :], preferred_element_type=jnp.float32)        # (T, HC)
    xq = jnp.dot(xq_rows, w1[C:, :], preferred_element_type=jnp.float32)  # (TQ, HC)

    pre = pdw_ref[...].astype(jnp.float32) + xk[None, :, :] + xq[:, None, :]  # (TQ,T,HC)

    # GELU (tanh approximation) with its 0.5 factor folded into w2 on the host:
    #   gelu(x) = 0.5 * x * (1 + tanh(sqrt(2/pi) * (x + 0.044715 x^3)))
    # TODO(synk): PyTorch nn.GELU() default is erf-exact; the tanh approximation
    # deviates ~1e-3 and stays on guaranteed Mosaic lowerings.
    c0 = jnp.float32(0.7978845608028654)              # sqrt(2/pi)
    u = c0 * (pre + jnp.float32(0.044715) * pre * pre * pre)
    g = pre * (1.0 + jnp.tanh(u))                     # == 2 * gelu(pre)

    # Per-head second att layer (C -> 1) as one block-diagonal matmul.
    scores = jnp.dot(g.reshape(TQ * T, HC), w2_ref[...],
                     preferred_element_type=jnp.float32) + b2_ref[...]    # (TQ*T, H)

    # Lane-dense softmax: key axis (T) on lanes -> (TQ, H, T); 2D additive
    # causal mask broadcast over heads; all softmax math in f32.
    wei = jnp.transpose(scores.reshape(TQ, T, H), (0, 2, 1))              # (TQ, H, T)
    wei = wei + mask_ref[...][:, None, :]
    m = jnp.max(wei, axis=-1, keepdims=True)
    e = jnp.exp(wei - m)
    p = e * pl.reciprocal(jnp.sum(e, axis=-1, keepdims=True), approx=True)  # (TQ,H,T)
    # attention dropout: identity (inference)

    # Value projection for all heads at once, then per-head (TQ,T)@(T,HS) MXU
    # matmuls (unrolled over the small static H) + lane concat.  No expansion
    # matrix, no big VPU multiply, no sublane reduction over T.
    v = jnp.dot(x, wv_ref[...], preferred_element_type=jnp.float32) + bv_ref[...]  # (T,E)
    head_outs = [
        jnp.dot(p[:, h, :], v[:, h * HS:(h + 1) * HS],
                preferred_element_type=jnp.float32)                       # (TQ, HS)
        for h in range(H)
    ]
    heads = jnp.concatenate(head_outs, axis=-1)                           # (TQ, E)

    # Fused output projection (lane-dense E_pad columns); final dropout is
    # identity (inference).
    o_ref[0] = (jnp.dot(heads.astype(wp_ref.dtype), wp_ref[...],
                        preferred_element_type=jnp.float32) + bp_ref[...])


def _vmem_budget_bytes():
    """Generation-aware VMEM limit: ~85% of physical VMEM (≈108 MiB on
    v5e/v6e's 128 MiB, ≈54 MiB on v7x's 64 MiB), with a safe 64 MiB fallback,
    leaving headroom for Mosaic internal scratch and double buffers."""
    try:
        cap = int(pltpu.get_tpu_info().vmem_capacity_bytes)
    except Exception:
        cap = 64 * 1024 * 1024
    return max(32 * 1024 * 1024, min(int(cap * 0.85), 110 * 1024 * 1024))


def _pick_tq(T, C, H, HS, E_pad, vmem_limit, mm_bytes):
    """Largest query tile whose per-step VMEM estimate fits the budget."""
    HC = H * C
    E = H * HS

    def step_bytes(tq):
        b = 2 * tq * T * 2 * C * mm_bytes                      # pos-dist block (x2 buf)
        b += 2 * (T + tq) * C * mm_bytes                       # x / xq blocks (x2 buf)
        b += 2 * (2 * C * HC + C * E + E * E_pad) * mm_bytes   # big weights (x2 buf)
        b += 2 * (HC * H + HC + H + E + E_pad) * 4             # w2_bd + biases
        b += tq * T * HC * mm_bytes                            # pd@W1 cache scratch
        b += tq * T * 4                                        # causal-mask scratch
        b += 2 * tq * T * HC * 4                               # live f32 pre / gelu
        b += 4 * tq * T * H * 4                                # scores / softmax temps
        b += 2 * tq * E_pad * 4                                # output block (x2 buf)
        return b

    cands = [t for t in range(8, min(T, 256) + 1, 8) if T % t == 0] or [T]
    fitting = [t for t in cands if step_bytes(t) <= vmem_limit]
    # TODO(synk): for very long T a key-axis grid with flash-style online
    # softmax is needed so VMEM stops scaling with full T.
    tq = max(fitting) if fitting else min(cands)
    # Prefer >=2 query tiles so the "parallel" grid axis can be sharded across
    # TensorCores (v7x has 2 TCs/chip), but only if the tile stays MXU-friendly.
    if T // tq < 2:
        smaller = [t for t in fitting if t <= tq // 2 and t >= 128]
        if smaller:
            tq = max(smaller)
    return tq


def multi_head_attention(x, st_pos_emb, pos_dist_emb, params, *, tq=None, use_bf16=True):
    """Pallas implementation of MultiHeadAttention.forward (inference)."""
    del st_pos_emb  # accepted for signature parity; unused, as in the PyTorch code
    B, T, C = x.shape
    H = params["w1"].shape[0]
    HS = params["wv"].shape[-1]
    E = H * HS
    HC = H * C
    E_out = params["wp"].shape[1]
    assert params["wp"].shape[0] == E, (
        f"proj consumes cat(heads) of width n_head*head_size={E}; got wp "
        f"{params['wp'].shape} (the torch module implicitly requires H*HS == n_embed)")
    assert pos_dist_emb.shape == (T, T, 2 * C)
    assert T % 8 == 0, "sequence length must be a multiple of 8 (sublane tile)"

    mm_dtype = jnp.bfloat16 if use_bf16 else jnp.float32
    mm_bytes = 2 if use_bf16 else 4
    vmem_limit = _vmem_budget_bytes()

    # Lane-dense output stores: pad the projection output axis up to >=128.
    E_pad = max(128, ((E_out + 127) // 128) * 128)

    if tq is None:
        tq = _pick_tq(T, C, H, HS, E_pad, vmem_limit, mm_bytes)
    assert T % tq == 0 and (tq == T or tq % 8 == 0), "query tile must divide T (mult of 8)"
    Q = T // tq

    scale = C ** -0.5
    # ---- host-side folding / head concatenation (tiny, once per call) ------
    w1_all = jnp.transpose(params["w1"], (1, 0, 2)).reshape(2 * C, HC).astype(mm_dtype)
    b1_all = params["b1"].reshape(1, HC).astype(jnp.float32)
    w2s = params["w2"].reshape(H, C) * (0.5 * scale)          # GELU 0.5 + C**-0.5 folded
    w2_bd = (jnp.eye(H, dtype=jnp.float32)[:, None, :] * w2s[:, :, None]).reshape(HC, H)
    b2s = (params["b2"].reshape(1, H) * scale).astype(jnp.float32)
    wv_all = jnp.transpose(params["wv"], (1, 0, 2)).reshape(C, E).astype(mm_dtype)
    bv_all = params["bv"].reshape(1, E).astype(jnp.float32)
    wp_pad = jnp.pad(params["wp"], ((0, 0), (0, E_pad - E_out))).astype(mm_dtype)
    bp_pad = jnp.pad(params["bp"].reshape(1, E_out),
                     ((0, 0), (0, E_pad - E_out))).astype(jnp.float32)

    # Flatten pos_dist_emb to 2D on the host (free, row-major) so the kernel's
    # dominant matmul needs no in-kernel reshape and streams in bf16.
    pd2d = pos_dist_emb.reshape(T * T, 2 * C).astype(mm_dtype)
    x_mm = x.astype(mm_dtype)

    # TODO(synk): single-buffer the constant-index weight inputs
    # (pipeline_mode=pl.Buffered(1)) once stable, to drop their duplicate
    # VMEM double-buffer copies.
    kernel = partial(mha_kernel, T=T, TQ=tq, C=C, H=H, HS=HS)
    out = pl.pallas_call(
        kernel,
        out_shape=jax.ShapeDtypeStruct((B, T, E_pad), jnp.float32),
        grid=(Q, B),
        in_specs=[
            pl.BlockSpec((tq * T, 2 * C), lambda q, b: (q, 0)),    # pos-dist rows
            pl.BlockSpec((1, T, C), lambda q, b: (b, 0, 0)),       # x (keys/values)
            pl.BlockSpec((1, tq, C), lambda q, b: (b, q, 0)),      # x (query rows)
            pl.BlockSpec((2 * C, HC), lambda q, b: (0, 0)),        # W1 (all heads)
            pl.BlockSpec((1, HC), lambda q, b: (0, 0)),            # b1 (all heads)
            pl.BlockSpec((HC, H), lambda q, b: (0, 0)),            # W2 block-diag (folded)
            pl.BlockSpec((1, H), lambda q, b: (0, 0)),             # b2 (scaled)
            pl.BlockSpec((C, E), lambda q, b: (0, 0)),             # value W (all heads)
            pl.BlockSpec((1, E), lambda q, b: (0, 0)),             # value b (all heads)
            pl.BlockSpec((E, E_pad), lambda q, b: (0, 0)),         # proj W (padded)
            pl.BlockSpec((1, E_pad), lambda q, b: (0, 0)),         # proj b (padded)
        ],
        out_specs=pl.BlockSpec((1, tq, E_pad), lambda q, b: (b, q, 0)),
        scratch_shapes=[pltpu.VMEM((tq, T, HC), mm_dtype),          # pd@W1 + b1 cache
                        pltpu.VMEM((tq, T), jnp.float32)],          # additive causal mask
        compiler_params=pltpu.CompilerParams(
            dimension_semantics=("parallel", "arbitrary"),
            vmem_limit_bytes=vmem_limit),
    )(pd2d, x_mm, x_mm, w1_all, b1_all, w2_bd, b2s, wv_all, bv_all, wp_pad, bp_pad)

    return out if E_pad == E_out else out[..., :E_out]


def init_params(key, n_embed, n_head, head_size):
    C, H, HS = n_embed, n_head, head_size
    ks = jax.random.split(key, 8)
    s = 0.1
    return dict(
        w1=jax.random.normal(ks[0], (H, 2 * C, C), jnp.float32) * s,   # att layer 1 (in, out)
        b1=jax.random.normal(ks[1], (H, 1, C), jnp.float32) * s,
        b2=jax.random.normal(ks[3], (H, 1, 1), jnp.float32) * s,
        w2=jax.random.normal(ks[2], (H, 1, C), jnp.float32) * s,       # att layer 2 (C -> 1)
        wv=jax.random.normal(ks[4], (H, C, HS), jnp.float32) * s,      # value (in, out)
        bv=jax.random.normal(ks[5], (H, 1, HS), jnp.float32) * s,
        wp=jax.random.normal(ks[6], (H * HS, C), jnp.float32) * s,     # proj (in, out); torch needs H*HS == n_embed
        bp=jax.random.normal(ks[7], (1, C), jnp.float32) * s,
    )


if __name__ == "__main__":
    key = jax.random.PRNGKey(0)
    B, T, C, H = 2, 8, 32, 4            # batch, block_size, n_embed, n_head
    HS = C // H                          # head_size
    kx, kpe, kpd, kw = jax.random.split(key, 4)

    x = jax.random.normal(kx, (B, T, C), jnp.float32)
    st_pos_emb = jax.random.normal(kpe, (T, C), jnp.float32)           # unused, as in torch
    pos_dist_emb = jax.random.normal(kpd, (T, T, 2 * C), jnp.float32) * 0.1
    params = init_params(kw, C, H, HS)

    out = multi_head_attention(x, st_pos_emb, pos_dist_emb, params)
    jax.block_until_ready(out)
    assert out.shape == (B, T, C) and out.dtype == jnp.float32
    print("KERNEL_OK")
</pallas_src>

<mosaic_0001>
module attributes {stable_mosaic.version = 11 : i64} {
  func.func @mha_kernel(%arg0: i32, %arg1: i32, %arg2: memref<64x64xbf16, #tpu.memory_space<vmem>>, %arg3: memref<1x8x32xbf16, #tpu.memory_space<vmem>>, %arg4: memref<1x8x32xbf16, #tpu.memory_space<vmem>>, %arg5: memref<64x128xbf16, #tpu.memory_space<vmem>>, %arg6: memref<1x128xf32, #tpu.memory_space<vmem>>, %arg7: memref<128x4xf32, #tpu.memory_space<vmem>>, %arg8: memref<1x4xf32, #tpu.memory_space<vmem>>, %arg9: memref<32x32xbf16, #tpu.memory_space<vmem>>, %arg10: memref<1x32xf32, #tpu.memory_space<vmem>>, %arg11: memref<32x128xbf16, #tpu.memory_space<vmem>>, %arg12: memref<1x128xf32, #tpu.memory_space<vmem>>, %arg13: memref<1x8x128xf32, #tpu.memory_space<vmem>>, %arg14: memref<8x8x128xbf16, #tpu.memory_space<vmem>>, %arg15: memref<8x8xf32, #tpu.memory_space<vmem>>) attributes {dimension_semantics = [#tpu.dimension_semantics<parallel>, #tpu.dimension_semantics<arbitrary>], iteration_bounds = array<i64: 1, 2>, scalar_prefetch = 0 : i64, scratch_operands = 2 : i64, tpu.core_type = #tpu.core_type<tc>, window_params = [{transform_indices = @transform_0, window_bounds = array<i64: 64, 64>}, {transform_indices = @transform_1, window_bounds = array<i64: 1, 8, 32>}, {transform_indices = @transform_2, window_bounds = array<i64: 1, 8, 32>}, {pipeline_mode = #tpu.pipeline_mode<synchronous>, transform_indices = @transform_3, window_bounds = array<i64: 64, 128>}, {pipeline_mode = #tpu.pipeline_mode<synchronous>, transform_indices = @transform_4, window_bounds = array<i64: 1, 128>}, {pipeline_mode = #tpu.pipeline_mode<synchronous>, transform_indices = @transform_5, window_bounds = array<i64: 128, 4>}, {pipeline_mode = #tpu.pipeline_mode<synchronous>, transform_indices = @transform_6, window_bounds = array<i64: 1, 4>}, {pipeline_mode = #tpu.pipeline_mode<synchronous>, transform_indices = @transform_7, window_bounds = array<i64: 32, 32>}, {pipeline_mode = #tpu.pipeline_mode<synchronous>, transform_indices = @transform_8, window_bounds = array<i64: 1, 32>}, {pipeline_mode = #tpu.pipeline_mode<synchronous>, transform_indices = @transform_9, window_bounds = array<i64: 32, 128>}, {pipeline_mode = #tpu.pipeline_mode<synchronous>, transform_indices = @transform_10, window_bounds = array<i64: 1, 128>}, {transform_indices = @transform_11, window_bounds = array<i64: 1, 8, 128>}]} {
    %c0_i32 = arith.constant 0 : i32
    %0 = arith.cmpi eq, %arg1, %c0_i32 : i32
    %1 = arith.extui %0 : i1 to i32
    %c0_i32_0 = arith.constant 0 : i32
    %2 = arith.cmpi ne, %1, %c0_i32_0 : i32
    scf.if %2 {
      %c0_41 = arith.constant 0 : index
      %c0_42 = arith.constant 0 : index
      %84 = vector.load %arg2[%c0_41, %c0_42] : memref<64x64xbf16, #tpu.memory_space<vmem>>, vector<64x64xbf16>
      %c0_43 = arith.constant 0 : index
      %c0_44 = arith.constant 0 : index
      %85 = vector.load %arg5[%c0_43, %c0_44] : memref<64x128xbf16, #tpu.memory_space<vmem>>, vector<64x128xbf16>
      %cst_45 = arith.constant dense<0.000000e+00> : vector<64x128xf32>
      %86 = tpu.matmul %84, %85, %cst_45 {dimension_numbers = #tpu.dot_dimension_numbers<[1], [0], [0], [1], [0, 0, 1, 1], [], []>} : vector<64x64xbf16>, vector<64x128xbf16>, vector<64x128xf32> -> vector<64x128xf32>
      %c0_46 = arith.constant 0 : index
      %c0_47 = arith.constant 0 : index
      %87 = vector.load %arg6[%c0_46, %c0_47] : memref<1x128xf32, #tpu.memory_space<vmem>>, vector<1x128xf32>
      %88 = vector.broadcast %87 : vector<1x128xf32> to vector<64x128xf32>
      %89 = arith.addf %86, %88 : vector<64x128xf32>
      %90 = vector.shape_cast %89 : vector<64x128xf32> to vector<8x8x128xf32>
      %91 = arith.truncf %90 : vector<8x8x128xf32> to vector<8x8x128xbf16>
      %c0_48 = arith.constant 0 : index
      %c0_49 = arith.constant 0 : index
      %c0_50 = arith.constant 0 : index
      %92 = vector.load %arg14[%c0_48, %c0_49, %c0_50] : memref<8x8x128xbf16, #tpu.memory_space<vmem>>, vector<8x8x128xbf16>
      tpu.vector_store %arg14[%c0_48, %c0_49, %c0_50], %91 {strides = array<i32>} : memref<8x8x128xbf16, #tpu.memory_space<vmem>>, vector<8x8x128xbf16>,
      %c8_i32 = arith.constant 8 : i32
      %93 = arith.muli %arg0, %c8_i32 : i32
      %94 = tpu.iota {dimensions = array<i32: 0>} : vector<8x8xi32>
      %95 = vector.broadcast %93 : i32 to vector<8x8xi32>
      %96 = arith.addi %95, %94 : vector<8x8xi32>
      %97 = tpu.iota {dimensions = array<i32: 1>} : vector<8x8xi32>
      %98 = arith.cmpi sle, %97, %96 : vector<8x8xi32>
      %cst_51 = arith.constant 0.000000e+00 : f32
      %cst_52 = arith.constant 0xFF800000 : f32
      %99 = vector.broadcast %cst_51 : f32 to vector<8x8xf32>
      %100 = vector.broadcast %cst_52 : f32 to vector<8x8xf32>
      %101 = arith.select %98, %99, %100 : vector<8x8xi1>, vector<8x8xf32>
      %c0_53 = arith.constant 0 : index
      %c0_54 = arith.constant 0 : index
      %102 = vector.load %arg15[%c0_53, %c0_54] : memref<8x8xf32, #tpu.memory_space<vmem>>, vector<8x8xf32>
      tpu.vector_store %arg15[%c0_53, %c0_54], %101 {strides = array<i32>} : memref<8x8xf32, #tpu.memory_space<vmem>>, vector<8x8xf32>,
    } else {
    }
    %c0 = arith.constant 0 : index
    %c0_1 = arith.constant 0 : index
    %c0_2 = arith.constant 0 : index
    %3 = vector.load %arg3[%c0, %c0_1, %c0_2] : memref<1x8x32xbf16, #tpu.memory_space<vmem>>, vector<1x8x32xbf16>
    %4 = vector.shape_cast %3 : vector<1x8x32xbf16> to vector<8x32xbf16>
    %c0_3 = arith.constant 0 : index
    %c0_4 = arith.constant 0 : index
    %c0_5 = arith.constant 0 : index
    %5 = vector.load %arg4[%c0_3, %c0_4, %c0_5] : memref<1x8x32xbf16, #tpu.memory_space<vmem>>, vector<1x8x32xbf16>
    %6 = vector.shape_cast %5 : vector<1x8x32xbf16> to vector<8x32xbf16>
    %c0_6 = arith.constant 0 : index
    %c0_7 = arith.constant 0 : index
    %7 = vector.load %arg5[%c0_6, %c0_7] : memref<64x128xbf16, #tpu.memory_space<vmem>>, vector<64x128xbf16>
    %8 = vector.extract_strided_slice %7 {offsets = [0, 0], sizes = [32, 128], strides = [1, 1]} : vector<64x128xbf16> to vector<32x128xbf16>
    %cst = arith.constant dense<0.000000e+00> : vector<8x128xf32>
    %9 = tpu.matmul %4, %8, %cst {dimension_numbers = #tpu.dot_dimension_numbers<[1], [0], [0], [1], [0, 0, 1, 1], [], []>} : vector<8x32xbf16>, vector<32x128xbf16>, vector<8x128xf32> -> vector<8x128xf32>
    %10 = vector.extract_strided_slice %7 {offsets = [32, 0], sizes = [32, 128], strides = [1, 1]} : vector<64x128xbf16> to vector<32x128xbf16>
    %cst_8 = arith.constant dense<0.000000e+00> : vector<8x128xf32>
    %11 = tpu.matmul %6, %10, %cst_8 {dimension_numbers = #tpu.dot_dimension_numbers<[1], [0], [0], [1], [0, 0, 1, 1], [], []>} : vector<8x32xbf16>, vector<32x128xbf16>, vector<8x128xf32> -> vector<8x128xf32>
    %c0_9 = arith.constant 0 : index
    %c0_10 = arith.constant 0 : index
    %c0_11 = arith.constant 0 : index
    %12 = vector.load %arg14[%c0_9, %c0_10, %c0_11] : memref<8x8x128xbf16, #tpu.memory_space<vmem>>, vector<8x8x128xbf16>
    %13 = arith.extf %12 : vector<8x8x128xbf16> to vector<8x8x128xf32>
    %14 = vector.shape_cast %9 : vector<8x128xf32> to vector<1x8x128xf32>
    %15 = vector.broadcast %14 : vector<1x8x128xf32> to vector<8x8x128xf32>
    %16 = arith.addf %13, %15 : vector<8x8x128xf32>
    %17 = vector.shape_cast %11 : vector<8x128xf32> to vector<8x1x128xf32>
    %18 = vector.broadcast %17 : vector<8x1x128xf32> to vector<8x8x128xf32>
    %19 = arith.addf %16, %18 : vector<8x8x128xf32>
    %cst_12 = arith.constant 4.471500e-02 : f32
    %20 = vector.broadcast %cst_12 : f32 to vector<8x8x128xf32>
    %21 = arith.mulf %20, %19 : vector<8x8x128xf32>
    %22 = arith.mulf %21, %19 : vector<8x8x128xf32>
    %23 = arith.mulf %22, %19 : vector<8x8x128xf32>
    %24 = arith.addf %19, %23 : vector<8x8x128xf32>
    %cst_13 = arith.constant 0.797884583 : f32
    %25 = vector.broadcast %cst_13 : f32 to vector<8x8x128xf32>
    %26 = arith.mulf %25, %24 : vector<8x8x128xf32>
    %27 = math.tanh %26 : vector<8x8x128xf32>
    %cst_14 = arith.constant 1.000000e+00 : f32
    %28 = vector.broadcast %cst_14 : f32 to vector<8x8x128xf32>
    %29 = arith.addf %28, %27 : vector<8x8x128xf32>
    %30 = arith.mulf %19, %29 : vector<8x8x128xf32>
    %31 = vector.shape_cast %30 : vector<8x8x128xf32> to vector<64x128xf32>
    %c0_15 = arith.constant 0 : index
    %c0_16 = arith.constant 0 : index
    %32 = vector.load %arg7[%c0_15, %c0_16] : memref<128x4xf32, #tpu.memory_space<vmem>>, vector<128x4xf32>
    %cst_17 = arith.constant dense<0.000000e+00> : vector<64x4xf32>
    %33 = tpu.matmul %31, %32, %cst_17 {dimension_numbers = #tpu.dot_dimension_numbers<[1], [0], [0], [1], [0, 0, 1, 1], [], []>} : vector<64x128xf32>, vector<128x4xf32>, vector<64x4xf32> -> vector<64x4xf32>
    %c0_18 = arith.constant 0 : index
    %c0_19 = arith.constant 0 : index
    %34 = vector.load %arg8[%c0_18, %c0_19] : memref<1x4xf32, #tpu.memory_space<vmem>>, vector<1x4xf32>
    %35 = vector.broadcast %34 : vector<1x4xf32> to vector<64x4xf32>
    %36 = arith.addf %33, %35 : vector<64x4xf32>
    %37 = vector.shape_cast %36 : vector<64x4xf32> to vector<8x8x4xf32>
    %38 = tpu.transpose %37, [0, 2, 1] : vector<8x8x4xf32> -> vector<8x4x8xf32>
    %c0_20 = arith.constant 0 : index
    %c0_21 = arith.constant 0 : index
    %39 = vector.load %arg15[%c0_20, %c0_21] : memref<8x8xf32, #tpu.memory_space<vmem>>, vector<8x8xf32>
    %40 = vector.shape_cast %39 : vector<8x8xf32> to vector<8x1x8xf32>
    %41 = vector.broadcast %40 : vector<8x1x8xf32> to vector<8x4x8xf32>
    %42 = arith.addf %38, %41 : vector<8x4x8xf32>
    %cst_22 = arith.constant dense<0xFF800000> : vector<8x4xf32>
    %43 = vector.multi_reduction <maximumf>, %42, %cst_22 [2] : vector<8x4x8xf32> to vector<8x4xf32>
    %44 = vector.shape_cast %43 : vector<8x4xf32> to vector<8x4x1xf32>
    %45 = vector.broadcast %44 : vector<8x4x1xf32> to vector<8x4x8xf32>
    %46 = arith.subf %42, %45 : vector<8x4x8xf32>
    %47 = math.exp %46 : vector<8x4x8xf32>
    %cst_23 = arith.constant dense<0.000000e+00> : vector<8x4xf32>
    %48 = vector.multi_reduction <add>, %47, %cst_23 [2] : vector<8x4x8xf32> to vector<8x4xf32>
    %49 = vector.shape_cast %48 : vector<8x4xf32> to vector<8x4x1xf32>
    %50 = tpu.reciprocal %49 {approx = true} : vector<8x4x1xf32> -> vector<8x4x1xf32>
    %51 = vector.broadcast %50 : vector<8x4x1xf32> to vector<8x4x8xf32>
    %52 = arith.mulf %47, %51 : vector<8x4x8xf32>
    %c0_24 = arith.constant 0 : index
    %c0_25 = arith.constant 0 : index
    %53 = vector.load %arg9[%c0_24, %c0_25] : memref<32x32xbf16, #tpu.memory_space<vmem>>, vector<32x32xbf16>
    %cst_26 = arith.constant dense<0.000000e+00> : vector<8x32xf32>
    %54 = tpu.matmul %4, %53, %cst_26 {dimension_numbers = #tpu.dot_dimension_numbers<[1], [0], [0], [1], [0, 0, 1, 1], [], []>} : vector<8x32xbf16>, vector<32x32xbf16>, vector<8x32xf32> -> vector<8x32xf32>
    %c0_27 = arith.constant 0 : index
    %c0_28 = arith.constant 0 : index
    %55 = vector.load %arg10[%c0_27, %c0_28] : memref<1x32xf32, #tpu.memory_space<vmem>>, vector<1x32xf32>
    %56 = vector.broadcast %55 : vector<1x32xf32> to vector<8x32xf32>
    %57 = arith.addf %54, %56 : vector<8x32xf32>
    %58 = vector.extract_strided_slice %52 {offsets = [0, 0, 0], sizes = [8, 1, 8], strides = [1, 1, 1]} : vector<8x4x8xf32> to vector<8x1x8xf32>
    %59 = vector.shape_cast %58 : vector<8x1x8xf32> to vector<8x8xf32>
    %60 = vector.extract_strided_slice %57 {offsets = [0, 0], sizes = [8, 8], strides = [1, 1]} : vector<8x32xf32> to vector<8x8xf32>
    %cst_29 = arith.constant dense<0.000000e+00> : vector<8x8xf32>
    %61 = tpu.matmul %59, %60, %cst_29 {dimension_numbers = #tpu.dot_dimension_numbers<[1], [0], [0], [1], [0, 0, 1, 1], [], []>} : vector<8x8xf32>, vector<8x8xf32>, vector<8x8xf32> -> vector<8x8xf32>
    %62 = vector.extract_strided_slice %52 {offsets = [0, 1, 0], sizes = [8, 1, 8], strides = [1, 1, 1]} : vector<8x4x8xf32> to vector<8x1x8xf32>
    %63 = vector.shape_cast %62 : vector<8x1x8xf32> to vector<8x8xf32>
    %64 = vector.extract_strided_slice %57 {offsets = [0, 8], sizes = [8, 8], strides = [1, 1]} : vector<8x32xf32> to vector<8x8xf32>
    %cst_30 = arith.constant dense<0.000000e+00> : vector<8x8xf32>
    %65 = tpu.matmul %63, %64, %cst_30 {dimension_numbers = #tpu.dot_dimension_numbers<[1], [0], [0], [1], [0, 0, 1, 1], [], []>} : vector<8x8xf32>, vector<8x8xf32>, vector<8x8xf32> -> vector<8x8xf32>
    %66 = vector.extract_strided_slice %52 {offsets = [0, 2, 0], sizes = [8, 1, 8], strides = [1, 1, 1]} : vector<8x4x8xf32> to vector<8x1x8xf32>
    %67 = vector.shape_cast %66 : vector<8x1x8xf32> to vector<8x8xf32>
    %68 = vector.extract_strided_slice %57 {offsets = [0, 16], sizes = [8, 8], strides = [1, 1]} : vector<8x32xf32> to vector<8x8xf32>
    %cst_31 = arith.constant dense<0.000000e+00> : vector<8x8xf32>
    %69 = tpu.matmul %67, %68, %cst_31 {dimension_numbers = #tpu.dot_dimension_numbers<[1], [0], [0], [1], [0, 0, 1, 1], [], []>} : vector<8x8xf32>, vector<8x8xf32>, vector<8x8xf32> -> vector<8x8xf32>
    %70 = vector.extract_strided_slice %52 {offsets = [0, 3, 0], sizes = [8, 1, 8], strides = [1, 1, 1]} : vector<8x4x8xf32> to vector<8x1x8xf32>
    %71 = vector.shape_cast %70 : vector<8x1x8xf32> to vector<8x8xf32>
    %72 = vector.extract_strided_slice %57 {offsets = [0, 24], sizes = [8, 8], strides = [1, 1]} : vector<8x32xf32> to vector<8x8xf32>
    %cst_32 = arith.constant dense<0.000000e+00> : vector<8x8xf32>
    %73 = tpu.matmul %71, %72, %cst_32 {dimension_numbers = #tpu.dot_dimension_numbers<[1], [0], [0], [1], [0, 0, 1, 1], [], []>} : vector<8x8xf32>, vector<8x8xf32>, vector<8x8xf32> -> vector<8x8xf32>
    %74 = tpu.concatenate %61, %65, %69, %73 in 1 : vector<8x8xf32>, vector<8x8xf32>, vector<8x8xf32>, vector<8x8xf32> -> vector<8x32xf32>
    %75 = arith.truncf %74 : vector<8x32xf32> to vector<8x32xbf16>
    %c0_33 = arith.constant 0 : index
    %c0_34 = arith.constant 0 : index
    %76 = vector.load %arg11[%c0_33, %c0_34] : memref<32x128xbf16, #tpu.memory_space<vmem>>, vector<32x128xbf16>
    %cst_35 = arith.constant dense<0.000000e+00> : vector<8x128xf32>
    %77 = tpu.matmul %75, %76, %cst_35 {dimension_numbers = #tpu.dot_dimension_numbers<[1], [0], [0], [1], [0, 0, 1, 1], [], []>} : vector<8x32xbf16>, vector<32x128xbf16>, vector<8x128xf32> -> vector<8x128xf32>
    %c0_36 = arith.constant 0 : index
    %c0_37 = arith.constant 0 : index
    %78 = vector.load %arg12[%c0_36, %c0_37] : memref<1x128xf32, #tpu.memory_space<vmem>>, vector<1x128xf32>
    %79 = vector.broadcast %78 : vector<1x128xf32> to vector<8x128xf32>
    %80 = arith.addf %77, %79 : vector<8x128xf32>
    %c0_38 = arith.constant 0 : index
    %c0_39 = arith.constant 0 : index
    %c0_40 = arith.constant 0 : index
    %81 = vector.load %arg13[%c0_38, %c0_39, %c0_40] : memref<1x8x128xf32, #tpu.memory_space<vmem>>, vector<1x8x128xf32>
    %82 = vector.shape_cast %81 : vector<1x8x128xf32> to vector<8x128xf32>
    %83 = vector.shape_cast %80 : vector<8x128xf32> to vector<1x8x128xf32>
    tpu.vector_store %arg13[%c0_38, %c0_39, %c0_40], %83 {strides = array<i32>} : memref<1x8x128xf32, #tpu.memory_space<vmem>>, vector<1x8x128xf32>,
    return
  }
  func.func @transform_0(%arg0: i32, %arg1: i32) -> (i32, i32) {
    %c0_i32 = arith.constant 0 : i32
    %c0_i32_0 = arith.constant 0 : i32
    return %arg0, %c0_i32 : i32, i32
  }
  func.func @transform_1(%arg0: i32, %arg1: i32) -> (i32, i32, i32) {
    %c0_i32 = arith.constant 0 : i32
    %c0_i32_0 = arith.constant 0 : i32
    %c0_i32_1 = arith.constant 0 : i32
    return %arg1, %c0_i32, %c0_i32_0 : i32, i32, i32
  }
  func.func @transform_2(%arg0: i32, %arg1: i32) -> (i32, i32, i32) {
    %c0_i32 = arith.constant 0 : i32
    %c0_i32_0 = arith.constant 0 : i32
    return %arg1, %arg0, %c0_i32 : i32, i32, i32
  }
  func.func @transform_3(%arg0: i32, %arg1: i32) -> (i32, i32) {
    %c0_i32 = arith.constant 0 : i32
    %c0_i32_0 = arith.constant 0 : i32
    %c0_i32_1 = arith.constant 0 : i32
    return %c0_i32, %c0_i32_0 : i32, i32
  }
  func.func @transform_4(%arg0: i32, %arg1: i32) -> (i32, i32) {
    %c0_i32 = arith.constant 0 : i32
    %c0_i32_0 = arith.constant 0 : i32
    %c0_i32_1 = arith.constant 0 : i32
    return %c0_i32, %c0_i32_0 : i32, i32
  }
  func.func @transform_5(%arg0: i32, %arg1: i32) -> (i32, i32) {
    %c0_i32 = arith.constant 0 : i32
    %c0_i32_0 = arith.constant 0 : i32
    %c0_i32_1 = arith.constant 0 : i32
    return %c0_i32, %c0_i32_0 : i32, i32
  }
  func.func @transform_6(%arg0: i32, %arg1: i32) -> (i32, i32) {
    %c0_i32 = arith.constant 0 : i32
    %c0_i32_0 = arith.constant 0 : i32
    %c0_i32_1 = arith.constant 0 : i32
    return %c0_i32, %c0_i32_0 : i32, i32
  }
  func.func @transform_7(%arg0: i32, %arg1: i32) -> (i32, i32) {
    %c0_i32 = arith.constant 0 : i32
    %c0_i32_0 = arith.constant 0 : i32
    %c0_i32_1 = arith.constant 0 : i32
    return %c0_i32, %c0_i32_0 : i32, i32
  }
  func.func @transform_8(%arg0: i32, %arg1: i32) -> (i32, i32) {
    %c0_i32 = arith.constant 0 : i32
    %c0_i32_0 = arith.constant 0 : i32
    %c0_i32_1 = arith.constant 0 : i32
    return %c0_i32, %c0_i32_0 : i32, i32
  }
  func.func @transform_9(%arg0: i32, %arg1: i32) -> (i32, i32) {
    %c0_i32 = arith.constant 0 : i32
    %c0_i32_0 = arith.constant 0 : i32
    %c0_i32_1 = arith.constant 0 : i32
    return %c0_i32, %c0_i32_0 : i32, i32
  }
  func.func @transform_10(%arg0: i32, %arg1: i32) -> (i32, i32) {
    %c0_i32 = arith.constant 0 : i32
    %c0_i32_0 = arith.constant 0 : i32
    %c0_i32_1 = arith.constant 0 : i32
    return %c0_i32, %c0_i32_0 : i32, i32
  }
  func.func @transform_11(%arg0: i32, %arg1: i32) -> (i32, i32, i32) {
    %c0_i32 = arith.constant 0 : i32
    %c0_i32_0 = arith.constant 0 : i32
    return %arg1, %arg0, %c0_i32 : i32, i32, i32
  }
}

</mosaic_0001>

<llo_original>
// kernel: tpu_custom_call.1
$region0: #{tpu_custom_call.1}
  #allocation0 [shape = 'u32[]', space=smem, size = 0x4, offset = 0x4, fixed_abs, tag = 'smem constant byte address 0x4 - core index']
  #allocation1 [shape = 'u32[144,128]{1,0:T(1,128)}', space=vmem, size = 0x12000, scoped, tag = 'internal scratch']
  #allocation2 [shape = 'bf16[8,8,128]{2,1,0:T(8,128)(2,1)}', space=vmem, size = 0x4000, scoped, tag = 'scratch operand']
  #allocation3 [shape = 'f32[8,8]{1,0:T(8,128)}', space=vmem, size = 0x1000, scoped, tag = 'scratch operand']
  %s0 = inlined_call_operand.vmem [shape: bf16[64,64], index: 0, kind: input, shape index: {}]
  %s1 = inlined_call_operand.vmem [shape: bf16[2,8,32], index: 1, kind: input, shape index: {}]
  %s2 = inlined_call_operand.vmem [shape: bf16[2,8,32], index: 2, kind: input, shape index: {}]
  %s3 = inlined_call_operand.vmem [shape: bf16[64,128], index: 3, kind: input, shape index: {}]
  %s4 = inlined_call_operand.vmem [shape: f32[1,128], index: 4, kind: input, shape index: {}]
  %s5 = inlined_call_operand.vmem [shape: f32[128,4], index: 5, kind: input, shape index: {}]
  %s6 = inlined_call_operand.vmem [shape: f32[1,4], index: 6, kind: input, shape index: {}]
  %s7 = inlined_call_operand.vmem [shape: bf16[32,32], index: 7, kind: input, shape index: {}]
  %s8 = inlined_call_operand.vmem [shape: f32[1,32], index: 8, kind: input, shape index: {}]
  %s9 = inlined_call_operand.vmem [shape: bf16[32,128], index: 9, kind: input, shape index: {}]
  %s10 = inlined_call_operand.vmem [shape: f32[1,128], index: 10, kind: input, shape index: {}]
  %s11 = inlined_call_operand.hbm [shape: f32[2,8,128], index: 11, kind: output, shape index: {}]
  %s12 = sld [smem:[#allocation0]]
  $region81: #{tpu_custom_call.1} parent=0
    _
  %s14 = ssub.s32 1, %s12
  %s15 = scalar_select 0, %s14, %s12
  $region1: #{tpu_custom_call.1} parent=0
    #allocation4 [shape = 'u8[8192]{0}', space=vmem, size = 0x2000, scoped, tag = 'output window, operand 0']
    #allocation5 [shape = 's32[2]{0}', space=sflag, size = 0x8, scoped, tag = 'scoped memory for tpu_custom_call.1']
    %16 = vsyncpa [#allocation5], 0
    %s17 = scalar_lea.sflag [#allocation5], 1
    %18 = vsyncpa %s17, 0
    loop: start=0, step=1, limit=4
    $region2: #{tpu_custom_call.1} parent=1 // loop_pre_header
      _
    $region3: #{tpu_custom_call.1} parent=1 // loop_header
      %s20 = sphi 0, %s24
      %p21 = scmp.ge.s32.totalorder %s20, 4
      %s27 = sphi 0, %s39
      %s28 = sphi 0, %s35
      %s29 = sphi 0, %s27
      %s30 = sphi 0, %s28
      %s31 = sphi 0, %s29
      %s32 = sphi 0, %s30
      %s42 = sphi 0, %s44
      %s45 = sphi 0, %s42
      %s46 = sphi 0, %s45
      %s62 = sphi 0, %s46
      %s68 = sphi 0, %s70
      %s71 = sphi 0, %s68
      %s72 = sphi 0, %s71
      %s88 = sphi 0, %s72
      %s96 = sphi 0, %s98
      %s99 = sphi 0, %s96
      %s100 = sphi 0, %s99
      %s116 = sphi 0, %s100
      %s120 = sphi 0, %s120
      %s122 = sphi 0, %s120
      %s123 = sphi 0, %s122
      %s137 = sphi 0, %s123
      %s141 = sphi 0, %s141
      %s143 = sphi 0, %s141
      %s144 = sphi 0, %s143
      %s158 = sphi 0, %s144
      %s162 = sphi 0, %s162
      %s164 = sphi 0, %s162
      %s165 = sphi 0, %s164
      %s179 = sphi 0, %s165
      %s183 = sphi 0, %s183
      %s185 = sphi 0, %s183
      %s186 = sphi 0, %s185
      %s200 = sphi 0, %s186
      %s204 = sphi 0, %s204
      %s206 = sphi 0, %s204
      %s207 = sphi 0, %s206
      %s221 = sphi 0, %s207
      %s225 = sphi 0, %s225
      %s227 = sphi 0, %s225
      %s228 = sphi 0, %s227
      %s242 = sphi 0, %s228
      %s246 = sphi 0, %s246
      %s248 = sphi 0, %s246
      %s249 = sphi 0, %s248
      %s263 = sphi 0, %s249
      %s267 = sphi 0, %s267
      %s269 = sphi 0, %s267
      %s270 = sphi 0, %s269
      %s284 = sphi 0, %s270
      %s292 = sphi 0, %s294
      %s295 = sphi 0, %s292
      %s296 = sphi 0, %s295
      %s312 = sphi 0, %s296
    $region4: #{tpu_custom_call.1} parent=1 // loop_header_branch
      %23 = sbr.rel (%p21) target = $region8
    $region5: #{tpu_custom_call.1} parent=1 // loop_body
      %s25 = ssub.s32 %s20, 1
      %s26 = ssub.s32 %s20, 2
      %s33 = sadd.s32 1, %s28
      %p34 = scmp.ge.s32.totalorder %s33, 2
      %s35 = scalar_select %p34, 0, %s33
      %s36 = sadd.s32 1, %s27
      %s37 = scalar_select %p34, %s36, %s27
      %p38 = scmp.ge.s32.totalorder %s37, 1
      %s39 = scalar_select %p38, 0, %s37
      %s40 = ssub.s32 %s27, %s39
      %p41 = scmp.eq.s32.totalorder %s40, 0
      %s43 = sadd.s32 %s42, 1
      %s44 = scalar_select %p41, %s42, %s43
      %p47 = pneg %p41
      %p48 = scmp.eq.s32.totalorder %s20, 1
      %p49 = por %p47, %p48
      %p50 = scmp.ne.s32.totalorder %s42, %s45
      %p51 = scmp.eq.s32.totalorder %s20, 0
      %p52 = por %p50, %p51
      %p53 = scmp.ne.s32.totalorder %s42, %s45
      %p54 = scmp.eq.s32.totalorder %s25, 1
      %p55 = por %p53, %p54
      %p56 = scmp.ne.s32.totalorder %s45, %s46
      %p57 = scmp.eq.s32.totalorder %s25, 0
      %p58 = por %p56, %p57
      %p59 = scmp.ne.s32.totalorder %s45, %s46
      %p60 = scmp.eq.s32.totalorder %s26, 1
      %p61 = por %p59, %p60
      %p63 = scmp.ne.s32.totalorder %s46, %s62
      %p64 = scmp.eq.s32.totalorder %s26, 0
      %p65 = por %p63, %p64
      %s66 = ssub.s32 %s28, %s35
      %p67 = scmp.eq.s32.totalorder %s66, 0
      %s69 = sadd.s32 %s68, 1
      %s70 = scalar_select %p67, %s68, %s69
      %p73 = pneg %p67
      %p74 = scmp.eq.s32.totalorder %s20, 1
      %p75 = por %p73, %p74
      %p76 = scmp.ne.s32.totalorder %s68, %s71
      %p77 = scmp.eq.s32.totalorder %s20, 0
      %p78 = por %p76, %p77
      %p79 = scmp.ne.s32.totalorder %s68, %s71
      %p80 = scmp.eq.s32.totalorder %s25, 1
      %p81 = por %p79, %p80
      %p82 = scmp.ne.s32.totalorder %s71, %s72
      %p83 = scmp.eq.s32.totalorder %s25, 0
      %p84 = por %p82, %p83
      %p85 = scmp.ne.s32.totalorder %s71, %s72
      %p86 = scmp.eq.s32.totalorder %s26, 1
      %p87 = por %p85, %p86
      %p89 = scmp.ne.s32.totalorder %s72, %s88
      %p90 = scmp.eq.s32.totalorder %s26, 0
      %p91 = por %p89, %p90
      %s92 = ssub.s32 %s28, %s35
      %s93 = ssub.s32 %s27, %s39
      %s94 = sor.u32 %s92, %s93
      %p95 = scmp.eq.s32.totalorder %s94, 0
      %s97 = sadd.s32 %s96, 1
      %s98 = scalar_select %p95, %s96, %s97
      %p101 = pneg %p95
      %p102 = scmp.eq.s32.totalorder %s20, 1
      %p103 = por %p101, %p102
      %p104 = scmp.ne.s32.totalorder %s96, %s99
      %p105 = scmp.eq.s32.totalorder %s20, 0
      %p106 = por %p104, %p105
      %p107 = scmp.ne.s32.totalorder %s96, %s99
      %p108 = scmp.eq.s32.totalorder %s25, 1
      %p109 = por %p107, %p108
      %p110 = scmp.ne.s32.totalorder %s99, %s100
      %p111 = scmp.eq.s32.totalorder %s25, 0
      %p112 = por %p110, %p111
      %p113 = scmp.ne.s32.totalorder %s99, %s100
      %p114 = scmp.eq.s32.totalorder %s26, 1
      %p115 = por %p113, %p114
      %p117 = scmp.ne.s32.totalorder %s100, %s116
      %p118 = scmp.eq.s32.totalorder %s26, 0
      %p119 = por %p117, %p118
      %s121 = sadd.s32 %s120, 1
      %p124 = scmp.eq.s32.totalorder %s20, 1
      %p125 = scmp.ne.s32.totalorder %s120, %s122
      %p126 = scmp.eq.s32.totalorder %s20, 0
      %p127 = por %p125, %p126
      %p128 = scmp.ne.s32.totalorder %s120, %s122
      %p129 = scmp.eq.s32.totalorder %s25, 1
      %p130 = por %p128, %p129
      %p131 = scmp.ne.s32.totalorder %s122, %s123
      %p132 = scmp.eq.s32.totalorder %s25, 0
      %p133 = por %p131, %p132
      %p134 = scmp.ne.s32.totalorder %s122, %s123
      %p135 = scmp.eq.s32.totalorder %s26, 1
      %p136 = por %p134, %p135
      %p138 = scmp.ne.s32.totalorder %s123, %s137
      %p139 = scmp.eq.s32.totalorder %s26, 0
      %p140 = por %p138, %p139
      %s142 = sadd.s32 %s141, 1
      %p145 = scmp.eq.s32.totalorder %s20, 1
      %p146 = scmp.ne.s32.totalorder %s141, %s143
      %p147 = scmp.eq.s32.totalorder %s20, 0
      %p148 = por %p146, %p147
      %p149 = scmp.ne.s32.totalorder %s141, %s143
      %p150 = scmp.eq.s32.totalorder %s25, 1
      %p151 = por %p149, %p150
      %p152 = scmp.ne.s32.totalorder %s143, %s144
      %p153 = scmp.eq.s32.totalorder %s25, 0
      %p154 = por %p152, %p153
      %p155 = scmp.ne.s32.totalorder %s143, %s144
      %p156 = scmp.eq.s32.totalorder %s26, 1
      %p157 = por %p155, %p156
      %p159 = scmp.ne.s32.totalorder %s144, %s158
      %p160 = scmp.eq.s32.totalorder %s26, 0
      %p161 = por %p159, %p160
      %s163 = sadd.s32 %s162, 1
      %p166 = scmp.eq.s32.totalorder %s20, 1
      %p167 = scmp.ne.s32.totalorder %s162, %s164
      %p168 = scmp.eq.s32.totalorder %s20, 0
      %p169 = por %p167, %p168
      %p170 = scmp.ne.s32.totalorder %s162, %s164
      %p171 = scmp.eq.s32.totalorder %s25, 1
      %p172 = por %p170, %p171
      %p173 = scmp.ne.s32.totalorder %s164, %s165
      %p174 = scmp.eq.s32.totalorder %s25, 0
      %p175 = por %p173, %p174
      %p176 = scmp.ne.s32.totalorder %s164, %s165
      %p177 = scmp.eq.s32.totalorder %s26, 1
      %p178 = por %p176, %p177
      %p180 = scmp.ne.s32.totalorder %s165, %s179
      %p181 = scmp.eq.s32.totalorder %s26, 0
      %p182 = por %p180, %p181
      %s184 = sadd.s32 %s183, 1
      %p187 = scmp.eq.s32.totalorder %s20, 1
      %p188 = scmp.ne.s32.totalorder %s183, %s185
      %p189 = scmp.eq.s32.totalorder %s20, 0
      %p190 = por %p188, %p189
      %p191 = scmp.ne.s32.totalorder %s183, %s185
      %p192 = scmp.eq.s32.totalorder %s25, 1
      %p193 = por %p191, %p192
      %p194 = scmp.ne.s32.totalorder %s185, %s186
      %p195 = scmp.eq.s32.totalorder %s25, 0
      %p196 = por %p194, %p195
      %p197 = scmp.ne.s32.totalorder %s185, %s186
      %p198 = scmp.eq.s32.totalorder %s26, 1
      %p199 = por %p197, %p198
      %p201 = scmp.ne.s32.totalorder %s186, %s200
      %p202 = scmp.eq.s32.totalorder %s26, 0
      %p203 = por %p201, %p202
      %s205 = sadd.s32 %s204, 1
      %p208 = scmp.eq.s32.totalorder %s20, 1
      %p209 = scmp.ne.s32.totalorder %s204, %s206
      %p210 = scmp.eq.s32.totalorder %s20, 0
      %p211 = por %p209, %p210
      %p212 = scmp.ne.s32.totalorder %s204, %s206
      %p213 = scmp.eq.s32.totalorder %s25, 1
      %p214 = por %p212, %p213
      %p215 = scmp.ne.s32.totalorder %s206, %s207
      %p216 = scmp.eq.s32.totalorder %s25, 0
      %p217 = por %p215, %p216
      %p218 = scmp.ne.s32.totalorder %s206, %s207
      %p219 = scmp.eq.s32.totalorder %s26, 1
      %p220 = por %p218, %p219
      %p222 = scmp.ne.s32.totalorder %s207, %s221
      %p223 = scmp.eq.s32.totalorder %s26, 0
      %p224 = por %p222, %p223
      %s226 = sadd.s32 %s225, 1
      %p229 = scmp.eq.s32.totalorder %s20, 1
      %p230 = scmp.ne.s32.totalorder %s225, %s227
      %p231 = scmp.eq.s32.totalorder %s20, 0
      %p232 = por %p230, %p231
      %p233 = scmp.ne.s32.totalorder %s225, %s227
      %p234 = scmp.eq.s32.totalorder %s25, 1
      %p235 = por %p233, %p234
      %p236 = scmp.ne.s32.totalorder %s227, %s228
      %p237 = scmp.eq.s32.totalorder %s25, 0
      %p238 = por %p236, %p237
      %p239 = scmp.ne.s32.totalorder %s227, %s228
      %p240 = scmp.eq.s32.totalorder %s26, 1
      %p241 = por %p239, %p240
      %p243 = scmp.ne.s32.totalorder %s228, %s242
      %p244 = scmp.eq.s32.totalorder %s26, 0
      %p245 = por %p243, %p244
      %s247 = sadd.s32 %s246, 1
      %p250 = scmp.eq.s32.totalorder %s20, 1
      %p251 = scmp.ne.s32.totalorder %s246, %s248
      %p252 = scmp.eq.s32.totalorder %s20, 0
      %p253 = por %p251, %p252
      %p254 = scmp.ne.s32.totalorder %s246, %s248
      %p255 = scmp.eq.s32.totalorder %s25, 1
      %p256 = por %p254, %p255
      %p257 = scmp.ne.s32.totalorder %s248, %s249
      %p258 = scmp.eq.s32.totalorder %s25, 0
      %p259 = por %p257, %p258
      %p260 = scmp.ne.s32.totalorder %s248, %s249
      %p261 = scmp.eq.s32.totalorder %s26, 1
      %p262 = por %p260, %p261
      %p264 = scmp.ne.s32.totalorder %s249, %s263
      %p265 = scmp.eq.s32.totalorder %s26, 0
      %p266 = por %p264, %p265
      %s268 = sadd.s32 %s267, 1
      %p271 = scmp.eq.s32.totalorder %s20, 1
      %p272 = scmp.ne.s32.totalorder %s267, %s269
      %p273 = scmp.eq.s32.totalorder %s20, 0
      %p274 = por %p272, %p273
      %p275 = scmp.ne.s32.totalorder %s267, %s269
      %p276 = scmp.eq.s32.totalorder %s25, 1
      %p277 = por %p275, %p276
      %p278 = scmp.ne.s32.totalorder %s269, %s270
      %p279 = scmp.eq.s32.totalorder %s25, 0
      %p280 = por %p278, %p279
      %p281 = scmp.ne.s32.totalorder %s269, %s270
      %p282 = scmp.eq.s32.totalorder %s26, 1
      %p283 = por %p281, %p282
      %p285 = scmp.ne.s32.totalorder %s270, %s284
      %p286 = scmp.eq.s32.totalorder %s26, 0
      %p287 = por %p285, %p286
      %s288 = ssub.s32 %s28, %s35
      %s289 = ssub.s32 %s27, %s39
      %s290 = sor.u32 %s288, %s289
      %p291 = scmp.eq.s32.totalorder %s290, 0
      %s293 = sadd.s32 %s292, 1
      %s294 = scalar_select %p291, %s292, %s293
      %p297 = pneg %p291
      %p298 = scmp.eq.s32.totalorder %s20, 1
      %p299 = por %p297, %p298
      %p300 = scmp.ne.s32.totalorder %s292, %s295
      %p301 = scmp.eq.s32.totalorder %s20, 0
      %p302 = por %p300, %p301
      %p303 = scmp.ne.s32.totalorder %s292, %s295
      %p304 = scmp.eq.s32.totalorder %s25, 1
      %p305 = por %p303, %p304
      %p306 = scmp.ne.s32.totalorder %s295, %s296
      %p307 = scmp.eq.s32.totalorder %s25, 0
      %p308 = por %p306, %p307
      %p309 = scmp.ne.s32.totalorder %s295, %s296
      %p310 = scmp.eq.s32.totalorder %s26, 1
      %p311 = por %p309, %p310
      %p313 = scmp.ne.s32.totalorder %s296, %s312
      %p314 = scmp.eq.s32.totalorder %s26, 0
      %p315 = por %p313, %p314
      %p316 = scmp.le.s32.totalorder 1, %s20
      %p317 = scmp.lt.s32.totalorder %s20, 3
      %p318 = pnand %p316, %p317
      %p319 = pneg %p318
      // Predicated region
      $region9: #{tpu_custom_call.1} parent=5 // pred_check
        _
      $region10: #{tpu_custom_call.1} parent=5 // pred_check_branch
        %321 = sbr.rel (%p318) target = $region12
      $region11: #{tpu_custom_call.1} parent=5 // pred_region
        %s322 = ssub.s32 %s20, 1
        // Predicated region
        $region13: #{tpu_custom_call.1} parent=11 // pred_check
          %p323 = pneg %p58
        $region14: #{tpu_custom_call.1} parent=11 // pred_check_branch
          %325 = sbr.rel (%p323) target = $region16
        $region15: #{tpu_custom_call.1} parent=11 // pred_region
          %s326 = smul.u32 8, %s29
          %p327 = scmp.lt.s32.totalorder %s326, 7
          %s328 = scalar_select %p327, %s326, 7
          %s329 = smul.addr %s328, 4
          %s330 = scalar_lea.vmem %s0, %s329
          %s331 = smul.u32 8, %s29
        $region16: #{tpu_custom_call.1} parent=11 // pred_fallthru
          _
        // Predicated region
        $region17: #{tpu_custom_call.1} parent=11 // pred_check
          %p332 = pneg %p133
        $region18: #{tpu_custom_call.1} parent=11 // pred_check_branch
          %334 = sbr.rel (%p332) target = $region20
        $region19: #{tpu_custom_call.1} parent=11 // pred_region
          _
        $region20: #{tpu_custom_call.1} parent=11 // pred_fallthru
          _
        // Predicated region
        $region21: #{tpu_custom_call.1} parent=11 // pred_check
          %p335 = pneg %p154
        $region22: #{tpu_custom_call.1} parent=11 // pred_check_branch
          %337 = sbr.rel (%p335) target = $region24
        $region23: #{tpu_custom_call.1} parent=11 // pred_region
          _
        $region24: #{tpu_custom_call.1} parent=11 // pred_fallthru
          _
        // Predicated region
        $region25: #{tpu_custom_call.1} parent=11 // pred_check
          %p338 = pneg %p175
        $region26: #{tpu_custom_call.1} parent=11 // pred_check_branch
          %340 = sbr.rel (%p338) target = $region28
        $region27: #{tpu_custom_call.1} parent=11 // pred_region
          _
        $region28: #{tpu_custom_call.1} parent=11 // pred_fallthru
          _
        // Predicated region
        $region29: #{tpu_custom_call.1} parent=11 // pred_check
          %p341 = pneg %p196
        $region30: #{tpu_custom_call.1} parent=11 // pred_check_branch
          %343 = sbr.rel (%p341) target = $region32
        $region31: #{tpu_custom_call.1} parent=11 // pred_region
          _
        $region32: #{tpu_custom_call.1} parent=11 // pred_fallthru
          _
        // Predicated region
        $region33: #{tpu_custom_call.1} parent=11 // pred_check
          %p344 = pneg %p217
        $region34: #{tpu_custom_call.1} parent=11 // pred_check_branch
          %346 = sbr.rel (%p344) target = $region36
        $region35: #{tpu_custom_call.1} parent=11 // pred_region
          _
        $region36: #{tpu_custom_call.1} parent=11 // pred_fallthru
          _
        // Predicated region
        $region37: #{tpu_custom_call.1} parent=11 // pred_check
          %p347 = pneg %p238
        $region38: #{tpu_custom_call.1} parent=11 // pred_check_branch
          %349 = sbr.rel (%p347) target = $region40
        $region39: #{tpu_custom_call.1} parent=11 // pred_region
          _
        $region40: #{tpu_custom_call.1} parent=11 // pred_fallthru
          _
        // Predicated region
        $region41: #{tpu_custom_call.1} parent=11 // pred_check
          %p350 = pneg %p259
        $region42: #{tpu_custom_call.1} parent=11 // pred_check_branch
          %352 = sbr.rel (%p350) target = $region44
        $region43: #{tpu_custom_call.1} parent=11 // pred_region
          _
        $region44: #{tpu_custom_call.1} parent=11 // pred_fallthru
          _
        // Predicated region
        $region45: #{tpu_custom_call.1} parent=11 // pred_check
          %p353 = pneg %p280
        $region46: #{tpu_custom_call.1} parent=11 // pred_check_branch
          %355 = sbr.rel (%p353) target = $region48
        $region47: #{tpu_custom_call.1} parent=11 // pred_region
          _
        $region48: #{tpu_custom_call.1} parent=11 // pred_fallthru
          _
      $region12: #{tpu_custom_call.1} parent=5 // pred_fallthru
        _
      %p356 = scmp.lt.s32.totalorder %s20, 2
      // Predicated region
      $region49: #{tpu_custom_call.1} parent=5 // pred_check
        %p357 = pneg %p356
      $region50: #{tpu_custom_call.1} parent=5 // pred_check_branch
        %359 = sbr.rel (%p357) target = $region52
      $region51: #{tpu_custom_call.1} parent=5 // pred_region
        // Predicated region
        $region53: #{tpu_custom_call.1} parent=51 // pred_check
          %p360 = pneg %p78
        $region54: #{tpu_custom_call.1} parent=51 // pred_check_branch
          %362 = sbr.rel (%p360) target = $region56
        $region55: #{tpu_custom_call.1} parent=51 // pred_region
          %p363 = scmp.lt.s32.totalorder %s28, 1
          %s364 = scalar_select %p363, %s28, 1
          %s365 = smul.addr %s364, 4
          %s366 = scalar_lea.vmem %s1, %s365
        $region56: #{tpu_custom_call.1} parent=51 // pred_fallthru
          _
        // Predicated region
        $region57: #{tpu_custom_call.1} parent=51 // pred_check
          %p367 = pneg %p106
        $region58: #{tpu_custom_call.1} parent=51 // pred_check_branch
          %369 = sbr.rel (%p367) target = $region60
        $region59: #{tpu_custom_call.1} parent=51 // pred_region
          %p370 = scmp.lt.s32.totalorder %s28, 1
          %s371 = scalar_select %p370, %s28, 1
          %p372 = scmp.lt.s32.totalorder %s27, 0
          %s373 = scalar_select %p372, %s27, 0
          %s374 = sadd.s32 %s373, %s371
          %s375 = smul.addr %s374, 4
          %s376 = scalar_lea.vmem %s2, %s375
        $region60: #{tpu_custom_call.1} parent=51 // pred_fallthru
          _
      $region52: #{tpu_custom_call.1} parent=5 // pred_fallthru
        _
      %p377 = scmp.le.s32.totalorder 1, %s20
      %p378 = scmp.lt.s32.totalorder %s20, 3
      %p379 = pnand %p377, %p378
      %p380 = pneg %p379
      // Predicated region
      $region61: #{tpu_custom_call.1} parent=5 // pred_check
        _
      $region62: #{tpu_custom_call.1} parent=5 // pred_check_branch
        %382 = sbr.rel (%p379) target = $region64
      $region63: #{tpu_custom_call.1} parent=5 // pred_region
        %s383 = ssub.s32 %s20, 1
        %s384 = smul.u32 8, %s29
        %p385 = scmp.lt.s32.totalorder %s384, 7
        %s386 = scalar_select %p385, %s384, 7
        %s387 = smul.addr %s386, 4
        %s388 = scalar_lea.vmem %s0, %s387
        %p389 = pneg %p58
        %p390 = pneg %p55
        %p391 = scmp.lt.s32.totalorder %s30, 1
        %s392 = scalar_select %p391, %s30, 1
        %s393 = smul.addr %s392, 4
        %s394 = scalar_lea.vmem %s1, %s393
        %p395 = pneg %p84
        %p396 = pneg %p81
        %p397 = scmp.lt.s32.totalorder %s30, 1
        %s398 = scalar_select %p397, %s30, 1
        %p399 = scmp.lt.s32.totalorder %s29, 0
        %s400 = scalar_select %p399, %s29, 0
        %s401 = sadd.s32 %s400, %s398
        %s402 = smul.addr %s401, 4
        %s403 = scalar_lea.vmem %s2, %s402
        %p404 = pneg %p112
        %p405 = pneg %p109
        %p406 = pneg %p133
        %p407 = pneg %p130
        %p408 = pneg %p154
        %p409 = pneg %p151
        %p410 = pneg %p175
        %p411 = pneg %p172
        %p412 = pneg %p196
        %p413 = pneg %p193
        %p414 = pneg %p217
        %p415 = pneg %p214
        %p416 = pneg %p238
        %p417 = pneg %p235
        %p418 = pneg %p259
        %p419 = pneg %p256
        %p420 = pneg %p280
        %p421 = pneg %p277
        %p422 = pneg %p308
        %p423 = pneg %p305
        %s424 = sand.u32 %s295, 1
        %s425 = scalar_lea.sflag [#allocation5], %s424
        %s426 = sand.u32 %s295, 1
        %s427 = smul.addr %s426, 8
        %s428 = scalar_lea.vmem [#allocation4], %s427
        %s429 = smul.u32 8, %s29
        %p430 = scmp.lt.s32.totalorder %s429, 7
        %s431 = scalar_select %p430, %s429, 7
        %s432 = smul.addr %s431, 4
        %s433 = scalar_lea.vmem %s0, %s432
        %s434 = smul.u32 8, %s29
        %p435 = scmp.lt.s32.totalorder %s30, 1
        %s436 = scalar_select %p435, %s30, 1
        %s437 = smul.addr %s436, 4
        %s438 = scalar_lea.vmem %s1, %s437
        %p439 = scmp.lt.s32.totalorder %s30, 1
        %s440 = scalar_select %p439, %s30, 1
        %p441 = scmp.lt.s32.totalorder %s29, 0
        %s442 = scalar_select %p441, %s29, 0
        %s443 = sadd.s32 %s442, %s440
        %s444 = smul.addr %s443, 4
        %s445 = scalar_lea.vmem %s2, %s444
        %p447 = scmp.eq.s32.totalorder %s30, 0
        // Predicated region
        $region65: #{tpu_custom_call.1} parent=63 // pred_check
          %p448 = pneg %p447
        $region66: #{tpu_custom_call.1} parent=63 // pred_check_branch
          %450 = sbr.rel (%p448) target = $region68
        $region67: #{tpu_custom_call.1} parent=63 // pred_region
          %v451 = vld [vmem:[%s433] sm:$0xf]
          %v452 = vld [vmem:[%s433 + $0x4] sm:$0xf]
          %v453 = vld [vmem:[%s433 + $0x8] sm:$0xf]
          %v454 = vld [vmem:[%s433 + $0xc] sm:$0xf]
          %v455 = vld [vmem:[%s433 + $0x10] sm:$0xf]
          %v456 = vld [vmem:[%s433 + $0x14] sm:$0xf]
          %v457 = vld [vmem:[%s433 + $0x18] sm:$0xf]
          %v458 = vld [vmem:[%s433 + $0x1c] sm:$0xf]
          %v459 = vld [vmem:[%s3] sm:$0xf]
          %v460 = vld [vmem:[%s3 + $0x4] sm:$0xf]
          %v461 = vld [vmem:[%s3 + $0x8] sm:$0xf]
          %v462 = vld [vmem:[%s3 + $0xc] sm:$0xf]
          %v463 = vld [vmem:[%s3 + $0x10] sm:$0xf]
          %v464 = vld [vmem:[%s3 + $0x14] sm:$0xf]
          %v465 = vld [vmem:[%s3 + $0x18] sm:$0xf]
          %v466 = vld [vmem:[%s3 + $0x1c] sm:$0xf]
          %v467 = vld [vmem:[%s4] sm:$0x1]
          %v469 = vlaneseq
          %v470 = vshrl.u32 %v469, 7
          %v471 = vsub.s32 0, %v470
          %v472 = vrot.slane %v467, %v471
          %v482 = vunpack.c.l.b16 %v451
          %v483 = vunpack.c.l.b16 %v452
          %v484 = vunpack.c.l.b16 %v453
          %v485 = vunpack.c.l.b16 %v454
          %v486 = vunpack.c.l.b16 %v455
          %v487 = vunpack.c.l.b16 %v456
          %v488 = vunpack.c.l.b16 %v457
          %v489 = vunpack.c.l.b16 %v458
          %v490 = vpack.c.b16 %v483, %v482
          %v491 = vpack.c.b16 %v485, %v484
          %v492 = vpack.c.b16 %v487, %v486
          %v493 = vpack.c.b16 %v489, %v488
          %v502 = vunpack.c.l.b16 %v459
          %v503 = vunpack.c.l.b16 %v460
          %v504 = vunpack.c.l.b16 %v461
          %v505 = vunpack.c.l.b16 %v462
          %v506 = vunpack.c.l.b16 %v463
          %v507 = vunpack.c.l.b16 %v464
          %v508 = vunpack.c.l.b16 %v465
          %v509 = vunpack.c.l.b16 %v466
          %v510 = vpack.c.b16 %v503, %v502
          %v511 = vpack.c.b16 %v505, %v504
          %v512 = vpack.c.b16 %v507, %v506
          %v513 = vpack.c.b16 %v509, %v508
          %vm518 = vcmask 523264
          %v520 = vsel %vm518, %v490, 0
          %v523 = vsel %vm518, %v491, 0
          %v526 = vsel %vm518, %v492, 0
          %v529 = vsel %vm518, %v493, 0
          %531 = vmatprep.subr.bf16.mxu0 0
          %532 = vmatpush1.bf16.msra.mxu0 %v510
          %533 = vmatprep.subr.bf16.mxu0 0
          %534 = vmatpush1.bf16.msra.mxu0 %v511
          %535 = vmatprep.subr.bf16.mxu0 0
          %536 = vmatpush1.bf16.msra.mxu0 %v512
          %537 = vmatprep.subr.bf16.mxu0 0
          %538 = vmatpush1.bf16.msra.mxu0 %v513
          %539 = vmatprep.subr.bf16.mxu0 0
          %540 = vmatpush1.bf16.msra.mxu0 0
          %541 = vmatprep.subr.bf16.mxu0 0
          %542 = vmatpush1.bf16.msra.mxu0 0
          %543 = vmatprep.subr.bf16.mxu0 0
          %544 = vmatpush1.bf16.msra.mxu0 0
          %545 = vmatprep.subr.bf16.mxu0 0
          %546 = vmatpush1.bf16.msra.mxu0 0
          %547 = vmatprep.subr.bf16.mxu0 0
          %548 = vmatpush1.bf16.msra.mxu0 0
          %549 = vmatprep.subr.bf16.mxu0 0
          %550 = vmatpush1.bf16.msra.mxu0 0
          %551 = vmatprep.subr.bf16.mxu0 0
          %552 = vmatpush1.bf16.msra.mxu0 0
          %553 = vmatprep.subr.bf16.mxu0 0
          %554 = vmatpush1.bf16.msra.mxu0 0
          %555 = vmatprep.subr.bf16.mxu0 0
          %556 = vmatpush1.bf16.msra.mxu0 0
          %557 = vmatprep.subr.bf16.mxu0 0
          %558 = vmatpush1.bf16.msra.mxu0 0
          %559 = vmatprep.subr.bf16.mxu0 0
          %560 = vmatpush1.bf16.msra.mxu0 0
          %561 = vmatprep.subr.bf16.mxu0 0
          %562 = vmatpush1.bf16.msra.mxu0 0
          %563 = vmatprep.mubr.bf16.mxu0 0
          %564 = vmatmul.mubr.bf16.gmra.mrb[0].mxu0 %v520
          %v565 = vpop.f32.mrb[0].mxu0
          %v566 = vadd.f32 %v472, %v565
          %v567 = vpop.f32.mrb[0].mxu0
          %v568 = vpop.f32.mrb[0].mxu0
          %v569 = vadd.f32 %v472, %v568
          %v570 = vpop.f32.mrb[0].mxu0
          %571 = vmatprep.mubr.bf16.mxu0 0
          %572 = vmatmul.mubr.bf16.gmra.mrb[0].mxu0 %v523
          %v573 = vpop.f32.mrb[0].mxu0
          %v574 = vadd.f32 %v472, %v573
          %v575 = vpop.f32.mrb[0].mxu0
          %v576 = vpop.f32.mrb[0].mxu0
          %v577 = vadd.f32 %v472, %v576
          %v578 = vpop.f32.mrb[0].mxu0
          %579 = vmatprep.mubr.bf16.mxu0 0
          %580 = vmatmul.mubr.bf16.gmra.mrb[0].mxu0 %v526
          %v581 = vpop.f32.mrb[0].mxu0
          %v582 = vadd.f32 %v472, %v581
          %v583 = vpop.f32.mrb[0].mxu0
          %v584 = vpop.f32.mrb[0].mxu0
          %v585 = vadd.f32 %v472, %v584
          %v586 = vpop.f32.mrb[0].mxu0
          %587 = vmatprep.mubr.bf16.mxu0 0
          %588 = vmatmul.mubr.bf16.gmra.mrb[0].mxu0 %v529
          %v589 = vpop.f32.mrb[0].mxu0
          %v590 = vadd.f32 %v472, %v589
          %v591 = vpop.f32.mrb[0].mxu0
          %v592 = vpop.f32.mrb[0].mxu0
          %v593 = vadd.f32 %v472, %v592
          %v594 = vpop.f32.mrb[0].mxu0
          %595 = vdwg.mxu0
          %v596 = vpack.c.bf16 %v566, %v566
          %v597 = vpack.c.bf16 %v569, %v569
          %v598 = vpack.c.bf16 %v574, %v574
          %v599 = vpack.c.bf16 %v577, %v577
          %v600 = vpack.c.bf16 %v582, %v582
          %v601 = vpack.c.bf16 %v585, %v585
          %v602 = vpack.c.bf16 %v590, %v590
          %v603 = vpack.c.bf16 %v593, %v593
          %604 = vst [vmem:[#allocation2] sm:$0xf] %v596
          %605 = vst [vmem:[#allocation2 + $0x4] sm:$0xf] %v597
          %606 = vst [vmem:[#allocation2 + $0x8] sm:$0xf] %v598
          %607 = vst [vmem:[#allocation2 + $0xc] sm:$0xf] %v599
          %608 = vst [vmem:[#allocation2 + $0x10] sm:$0xf] %v600
          %609 = vst [vmem:[#allocation2 + $0x14] sm:$0xf] %v601
          %610 = vst [vmem:[#allocation2 + $0x18] sm:$0xf] %v602
          %611 = vst [vmem:[#allocation2 + $0x1c] sm:$0xf] %v603
          %s612 = smul.u32 %s29, 8
          %v613 = vlaneseq
          %v614 = vshrl.u32 %v613, 7
          %v615 = vstv %s612
          %v616 = vadd.s32 %v615, %v614
          %v617 = vlaneseq
          %v618 = vand.u32 %v617, 127
          %vm619 = vcmp.le.s32.totalorder %v618, %v616
          %v620 = vsel %vm619, 0.0, -inf
          %vm621 = vcmask 64512
          %622 = vst.msk [vmem:[#allocation3] sm:$0xff] %vm621, %v620
        $region68: #{tpu_custom_call.1} parent=63 // pred_fallthru
          _
        %v623 = vld [vmem:[%s438] sm:$0xf]
        %v624 = vld [vmem:[%s445] sm:$0xf]
        %v625 = vld [vmem:[%s3] sm:$0xf]
        %v626 = vld [vmem:[%s3 + $0x4] sm:$0xf]
        %v627 = vld [vmem:[%s3 + $0x8] sm:$0xf]
        %v628 = vld [vmem:[%s3 + $0xc] sm:$0xf]
        %v629 = vld [vmem:[%s3 + $0x10] sm:$0xf]
        %v630 = vld [vmem:[%s3 + $0x14] sm:$0xf]
        %v631 = vld [vmem:[%s3 + $0x18] sm:$0xf]
        %v632 = vld [vmem:[%s3 + $0x1c] sm:$0xf]
        %v637 = vunpack.c.l.b16 %v625
        %v638 = vunpack.c.l.b16 %v626
        %v639 = vunpack.c.l.b16 %v627
        %v640 = vunpack.c.l.b16 %v628
        %v641 = vpack.c.b16 %v638, %v637
        %v642 = vpack.c.b16 %v640, %v639
        %vm645 = vcmask 261120
        %v647 = vsel %vm645, %v623, 0
        %649 = vmatprep.subr.bf16.mxu0 0
        %650 = vmatpush1.bf16.msra.mxu0 %v641
        %651 = vmatprep.subr.bf16.mxu0 0
        %652 = vmatpush1.bf16.msra.mxu0 %v642
        %653 = vmatprep.subr.bf16.mxu0 0
        %654 = vmatpush1.bf16.msra.mxu0 0
        %655 = vmatprep.subr.bf16.mxu0 0
        %656 = vmatpush1.bf16.msra.mxu0 0
        %657 = vmatprep.subr.bf16.mxu0 0
        %658 = vmatpush1.bf16.msra.mxu0 0
        %659 = vmatprep.subr.bf16.mxu0 0
        %660 = vmatpush1.bf16.msra.mxu0 0
        %661 = vmatprep.subr.bf16.mxu0 0
        %662 = vmatpush1.bf16.msra.mxu0 0
        %663 = vmatprep.subr.bf16.mxu0 0
        %664 = vmatpush1.bf16.msra.mxu0 0
        %665 = vmatprep.subr.bf16.mxu0 0
        %666 = vmatpush1.bf16.msra.mxu0 0
        %667 = vmatprep.subr.bf16.mxu0 0
        %668 = vmatpush1.bf16.msra.mxu0 0
        %669 = vmatprep.subr.bf16.mxu0 0
        %670 = vmatpush1.bf16.msra.mxu0 0
        %671 = vmatprep.subr.bf16.mxu0 0
        %672 = vmatpush1.bf16.msra.mxu0 0
        %673 = vmatprep.subr.bf16.mxu0 0
        %674 = vmatpush1.bf16.msra.mxu0 0
        %675 = vmatprep.subr.bf16.mxu0 0
        %676 = vmatpush1.bf16.msra.mxu0 0
        %677 = vmatprep.subr.bf16.mxu0 0
        %678 = vmatpush1.bf16.msra.mxu0 0
        %679 = vmatprep.subr.bf16.mxu0 0
        %680 = vmatpush1.bf16.msra.mxu0 0
        %681 = vmatprep.mubr.bf16.mxu0 0
        %682 = vmatmul.mubr.bf16.gmra.mrb[0].mxu0 %v647
        %v683 = vpop.f32.mrb[0].mxu0
        %v684 = vadd.f32 0.0, %v683
        %v685 = vpop.f32.mrb[0].mxu0
        %v686 = vpop.f32.mrb[0].mxu0
        %v687 = vpop.f32.mrb[0].mxu0
        %688 = vdwg.mxu0
        %v693 = vunpack.c.l.b16 %v629
        %v694 = vunpack.c.l.b16 %v630
        %v695 = vunpack.c.l.b16 %v631
        %v696 = vunpack.c.l.b16 %v632
        %v697 = vpack.c.b16 %v694, %v693
        %v698 = vpack.c.b16 %v696, %v695
        %v702 = vsel %vm645, %v624, 0
        %704 = vmatprep.subr.bf16.mxu0 0
        %705 = vmatpush1.bf16.msra.mxu0 %v697
        %706 = vmatprep.subr.bf16.mxu0 0
        %707 = vmatpush1.bf16.msra.mxu0 %v698
        %708 = vmatprep.subr.bf16.mxu0 0
        %709 = vmatpush1.bf16.msra.mxu0 0
        %710 = vmatprep.subr.bf16.mxu0 0
        %711 = vmatpush1.bf16.msra.mxu0 0
        %712 = vmatprep.subr.bf16.mxu0 0
        %713 = vmatpush1.bf16.msra.mxu0 0
        %714 = vmatprep.subr.bf16.mxu0 0
        %715 = vmatpush1.bf16.msra.mxu0 0
        %716 = vmatprep.subr.bf16.mxu0 0
        %717 = vmatpush1.bf16.msra.mxu0 0
        %718 = vmatprep.subr.bf16.mxu0 0
        %719 = vmatpush1.bf16.msra.mxu0 0
        %720 = vmatprep.subr.bf16.mxu0 0
        %721 = vmatpush1.bf16.msra.mxu0 0
        %722 = vmatprep.subr.bf16.mxu0 0
        %723 = vmatpush1.bf16.msra.mxu0 0
        %724 = vmatprep.subr.bf16.mxu0 0
        %725 = vmatpush1.bf16.msra.mxu0 0
        %726 = vmatprep.subr.bf16.mxu0 0
        %727 = vmatpush1.bf16.msra.mxu0 0
        %728 = vmatprep.subr.bf16.mxu0 0
        %729 = vmatpush1.bf16.msra.mxu0 0
        %730 = vmatprep.subr.bf16.mxu0 0
        %731 = vmatpush1.bf16.msra.mxu0 0
        %732 = vmatprep.subr.bf16.mxu0 0
        %733 = vmatpush1.bf16.msra.mxu0 0
        %734 = vmatprep.subr.bf16.mxu0 0
        %735 = vmatpush1.bf16.msra.mxu0 0
        %736 = vmatprep.mubr.bf16.mxu0 0
        %737 = vmatmul.mubr.bf16.gmra.mrb[0].mxu0 %v702
        %v738 = vpop.f32.mrb[0].mxu0
        %v739 = vadd.f32 0.0, %v738
        %v740 = vpop.f32.mrb[0].mxu0
        %v741 = vpop.f32.mrb[0].mxu0
        %v742 = vpop.f32.mrb[0].mxu0
        %743 = vdwg.mxu0
        %v744 = vld [vmem:[#allocation2] sm:$0xf]
        %v745 = vld [vmem:[#allocation2 + $0x4] sm:$0xf]
        %v746 = vld [vmem:[#allocation2 + $0x8] sm:$0xf]
        %v747 = vld [vmem:[#allocation2 + $0xc] sm:$0xf]
        %v748 = vld [vmem:[#allocation2 + $0x10] sm:$0xf]
        %v749 = vld [vmem:[#allocation2 + $0x14] sm:$0xf]
        %v750 = vld [vmem:[#allocation2 + $0x18] sm:$0xf]
        %v751 = vld [vmem:[#allocation2 + $0x1c] sm:$0xf]
        %v752 = vunpack.c.l.bf16 %v744
        %v753 = vunpack.c.l.bf16 %v745
        %v754 = vunpack.c.l.bf16 %v746
        %v755 = vunpack.c.l.bf16 %v747
        %v756 = vunpack.c.l.bf16 %v748
        %v757 = vunpack.c.l.bf16 %v749
        %v758 = vunpack.c.l.bf16 %v750
        %v759 = vunpack.c.l.bf16 %v751
        %v760 = vadd.f32 %v752, %v684
        %v761 = vadd.f32 %v753, %v684
        %v762 = vadd.f32 %v754, %v684
        %v763 = vadd.f32 %v755, %v684
        %v764 = vadd.f32 %v756, %v684
        %v765 = vadd.f32 %v757, %v684
        %v766 = vadd.f32 %v758, %v684
        %v767 = vadd.f32 %v759, %v684
        %v769 = vcombine.high %v739, %v739
        %v771 = vunpack.c.l.s4 1966171168
        %v772 = vunpack.c.0.s8 %v771
        %v773 = vlaneseq
        %v774 = vshrl.u32 %v773, 7
        %v775 = vsub.s32 %v772, %v774
        %v776 = vrot.slane %v739, %v775
        %v778 = vunpack.c.l.s4 1966171168
        %v779 = vunpack.c.0.s8 %v778
        %v780 = vlaneseq
        %v781 = vshrl.u32 %v780, 7
        %v782 = vsub.s32 %v779, %v781
        %v783 = vrot.slane %v769, %v782
        %v784 = vcombine.high %v776, %v776
        %v785 = vcombine.high %v783, %v783
        %v787 = vunpack.c.l.s4 1966171168
        %v788 = vunpack.c.0.s8 %v787
        %v789 = vlaneseq
        %v790 = vshrl.u32 %v789, 7
        %v791 = vsub.s32 %v788, %v790
        %v792 = vrot.slane %v776, %v791
        %v794 = vunpack.c.l.s4 1966171168
        %v795 = vunpack.c.0.s8 %v794
        %v796 = vlaneseq
        %v797 = vshrl.u32 %v796, 7
        %v798 = vsub.s32 %v795, %v797
        %v799 = vrot.slane %v783, %v798
        %v801 = vunpack.c.l.s4 1966171168
        %v802 = vunpack.c.0.s8 %v801
        %v803 = vlaneseq
        %v804 = vshrl.u32 %v803, 7
        %v805 = vsub.s32 %v802, %v804
        %v806 = vrot.slane %v784, %v805
        %v808 = vunpack.c.l.s4 1966171168
        %v809 = vunpack.c.0.s8 %v808
        %v810 = vlaneseq
        %v811 = vshrl.u32 %v810, 7
        %v812 = vsub.s32 %v809, %v811
        %v813 = vrot.slane %v785, %v812
        %v814 = vcombine.high %v792, %v792
        %v815 = vcombine.high %v799, %v799
        %v816 = vcombine.high %v806, %v806
        %v817 = vcombine.high %v813, %v813
        %v818 = vlaneseq
        %v819 = vshrl.u32 %v818, 7
        %v820 = vsub.s32 0, %v819
        %v821 = vrot.slane %v792, %v820
        %v822 = vlaneseq
        %v823 = vshrl.u32 %v822, 7
        %v824 = vsub.s32 0, %v823
        %v825 = vrot.slane %v806, %v824
        %v826 = vlaneseq
        %v827 = vshrl.u32 %v826, 7
        %v828 = vsub.s32 0, %v827
        %v829 = vrot.slane %v814, %v828
        %v830 = vlaneseq
        %v831 = vshrl.u32 %v830, 7
        %v832 = vsub.s32 0, %v831
        %v833 = vrot.slane %v816, %v832
        %v834 = vlaneseq
        %v835 = vshrl.u32 %v834, 7
        %v836 = vsub.s32 0, %v835
        %v837 = vrot.slane %v799, %v836
        %v838 = vlaneseq
        %v839 = vshrl.u32 %v838, 7
        %v840 = vsub.s32 0, %v839
        %v841 = vrot.slane %v813, %v840
        %v842 = vlaneseq
        %v843 = vshrl.u32 %v842, 7
        %v844 = vsub.s32 0, %v843
        %v845 = vrot.slane %v815, %v844
        %v846 = vlaneseq
        %v847 = vshrl.u32 %v846, 7
        %v848 = vsub.s32 0, %v847
        %v849 = vrot.slane %v817, %v848
        %v858 = vadd.f32 %v760, %v821
        %v859 = vadd.f32 %v761, %v825
        %v860 = vadd.f32 %v762, %v829
        %v861 = vadd.f32 %v763, %v833
        %v862 = vadd.f32 %v764, %v837
        %v863 = vadd.f32 %v765, %v841
        %v864 = vadd.f32 %v766, %v845
        %v865 = vadd.f32 %v767, %v849
        %v866 = vmul.f32 %v858, 0.044715
        %v867 = vmul.f32 %v859, 0.044715
        %v868 = vmul.f32 %v860, 0.044715
        %v869 = vmul.f32 %v861, 0.044715
        %v870 = vmul.f32 %v862, 0.044715
        %v871 = vmul.f32 %v863, 0.044715
        %v872 = vmul.f32 %v864, 0.044715
        %v873 = vmul.f32 %v865, 0.044715
        %v874 = vmul.f32 %v866, %v858
        %v875 = vmul.f32 %v867, %v859
        %v876 = vmul.f32 %v868, %v860
        %v877 = vmul.f32 %v869, %v861
        %v878 = vmul.f32 %v870, %v862
        %v879 = vmul.f32 %v871, %v863
        %v880 = vmul.f32 %v872, %v864
        %v881 = vmul.f32 %v873, %v865
        %v882 = vmul.f32 %v874, %v858
        %v883 = vmul.f32 %v875, %v859
        %v884 = vmul.f32 %v876, %v860
        %v885 = vmul.f32 %v877, %v861
        %v886 = vmul.f32 %v878, %v862
        %v887 = vmul.f32 %v879, %v863
        %v888 = vmul.f32 %v880, %v864
        %v889 = vmul.f32 %v881, %v865
        %v890 = vadd.f32 %v858, %v882
        %v891 = vadd.f32 %v859, %v883
        %v892 = vadd.f32 %v860, %v884
        %v893 = vadd.f32 %v861, %v885
        %v894 = vadd.f32 %v862, %v886
        %v895 = vadd.f32 %v863, %v887
        %v896 = vadd.f32 %v864, %v888
        %v897 = vadd.f32 %v865, %v889
        %v898 = vmul.f32 %v890, 0.7978846
        %v899 = vmul.f32 %v891, 0.7978846
        %v900 = vmul.f32 %v892, 0.7978846
        %v901 = vmul.f32 %v893, 0.7978846
        %v902 = vmul.f32 %v894, 0.7978846
        %v903 = vmul.f32 %v895, 0.7978846
        %v904 = vmul.f32 %v896, 0.7978846
        %v905 = vmul.f32 %v897, 0.7978846
        %v906 = vtanh.pop %v898
        %v907 = vtanh.pop %v899
        %v908 = vtanh.pop %v900
        %v909 = vtanh.pop %v901
        %v910 = vtanh.pop %v902
        %v911 = vtanh.pop %v903
        %v912 = vtanh.pop %v904
        %v913 = vtanh.pop %v905
        %v914 = vadd.f32 %v906, 1.0
        %v915 = vadd.f32 %v907, 1.0
        %v916 = vadd.f32 %v908, 1.0
        %v917 = vadd.f32 %v909, 1.0
        %v918 = vadd.f32 %v910, 1.0
        %v919 = vadd.f32 %v911, 1.0
        %v920 = vadd.f32 %v912, 1.0
        %v921 = vadd.f32 %v913, 1.0
        %v922 = vmul.f32 %v858, %v914
        %v923 = vmul.f32 %v859, %v915
        %v924 = vmul.f32 %v860, %v916
        %v925 = vmul.f32 %v861, %v917
        %v926 = vmul.f32 %v862, %v918
        %v927 = vmul.f32 %v863, %v919
        %v928 = vmul.f32 %v864, %v920
        %v929 = vmul.f32 %v865, %v921
        %v930 = vld [vmem:[%s5] sm:$0xff]
        %v931 = vld [vmem:[%s5 + $0x8] sm:$0xff]
        %v932 = vld [vmem:[%s5 + $0x10] sm:$0xff]
        %v933 = vld [vmem:[%s5 + $0x18] sm:$0xff]
        %v934 = vld [vmem:[%s5 + $0x20] sm:$0xff]
        %v935 = vld [vmem:[%s5 + $0x28] sm:$0xff]
        %v936 = vld [vmem:[%s5 + $0x30] sm:$0xff]
        %v937 = vld [vmem:[%s5 + $0x38] sm:$0xff]
        %v938 = vld [vmem:[%s5 + $0x40] sm:$0xff]
        %v939 = vld [vmem:[%s5 + $0x48] sm:$0xff]
        %v940 = vld [vmem:[%s5 + $0x50] sm:$0xff]
        %v941 = vld [vmem:[%s5 + $0x58] sm:$0xff]
        %v942 = vld [vmem:[%s5 + $0x60] sm:$0xff]
        %v943 = vld [vmem:[%s5 + $0x68] sm:$0xff]
        %v944 = vld [vmem:[%s5 + $0x70] sm:$0xff]
        %v945 = vld [vmem:[%s5 + $0x78] sm:$0xff]
        %v946 = vld [vmem:[%s6] sm:$0x1]
        %v948 = vlaneseq
        %v949 = vshrl.u32 %v948, 7
        %v950 = vsub.s32 0, %v949
        %v951 = vrot.slane %v946, %v950
        %953 = vmatprep.subr.mxu0 0.0
        %954 = vmatpush1.msra.mxu0 %v930
        %955 = vmatprep.subr.mxu0 0.0
        %956 = vmatpush1.msra.mxu0 %v931
        %957 = vmatprep.subr.mxu0 0.0
        %958 = vmatpush1.msra.mxu0 %v932
        %959 = vmatprep.subr.mxu0 0.0
        %960 = vmatpush1.msra.mxu0 %v933
        %961 = vmatprep.subr.mxu0 0.0
        %962 = vmatpush1.msra.mxu0 %v934
        %963 = vmatprep.subr.mxu0 0.0
        %964 = vmatpush1.msra.mxu0 %v935
        %965 = vmatprep.subr.mxu0 0.0
        %966 = vmatpush1.msra.mxu0 %v936
        %967 = vmatprep.subr.mxu0 0.0
        %968 = vmatpush1.msra.mxu0 %v937
        %969 = vmatprep.subr.mxu0 0.0
        %970 = vmatpush1.msra.mxu0 %v938
        %971 = vmatprep.subr.mxu0 0.0
        %972 = vmatpush1.msra.mxu0 %v939
        %973 = vmatprep.subr.mxu0 0.0
        %974 = vmatpush1.msra.mxu0 %v940
        %975 = vmatprep.subr.mxu0 0.0
        %976 = vmatpush1.msra.mxu0 %v941
        %977 = vmatprep.subr.mxu0 0.0
        %978 = vmatpush1.msra.mxu0 %v942
        %979 = vmatprep.subr.mxu0 0.0
        %980 = vmatpush1.msra.mxu0 %v943
        %981 = vmatprep.subr.mxu0 0.0
        %982 = vmatpush1.msra.mxu0 %v944
        %983 = vmatprep.subr.mxu0 0.0
        %984 = vmatpush1.msra.mxu0 %v945
        %985 = vmatprep.subr.mxu0 0.0
        %986 = vmatpush1.msra.mxu0 0.0
        %987 = vmatprep.subr.mxu0 0.0
        %988 = vmatpush1.msra.mxu0 0.0
        %989 = vmatprep.subr.mxu0 0.0
        %990 = vmatpush1.msra.mxu0 0.0
        %991 = vmatprep.subr.mxu0 0.0
        %992 = vmatpush1.msra.mxu0 0.0
        %993 = vmatprep.subr.mxu0 0.0
        %994 = vmatpush1.msra.mxu0 0.0
        %995 = vmatprep.subr.mxu0 0.0
        %996 = vmatpush1.msra.mxu0 0.0
        %997 = vmatprep.subr.mxu0 0.0
        %998 = vmatpush1.msra.mxu0 0.0
        %999 = vmatprep.subr.mxu0 0.0
        %1000 = vmatpush1.msra.mxu0 0.0
        %1001 = vmatprep.subr.mxu0 0.0
        %1002 = vmatpush1.msra.mxu0 0.0
        %1003 = vmatprep.subr.mxu0 0.0
        %1004 = vmatpush1.msra.mxu0 0.0
        %1005 = vmatprep.subr.mxu0 0.0
        %1006 = vmatpush1.msra.mxu0 0.0
        %1007 = vmatprep.subr.mxu0 0.0
        %1008 = vmatpush1.msra.mxu0 0.0
        %1009 = vmatprep.subr.mxu0 0.0
        %1010 = vmatpush1.msra.mxu0 0.0
        %1011 = vmatprep.subr.mxu0 0.0
        %1012 = vmatpush1.msra.mxu0 0.0
        %1013 = vmatprep.subr.mxu0 0.0
        %1014 = vmatpush1.msra.mxu0 0.0
        %1015 = vmatprep.subr.mxu0 0.0
        %1016 = vmatpush1.msra.mxu0 0.0
        %1017 = vmatprep.mubr.f32.mxu0 0.0
        %1018 = vmatmul.mubr.f32.gmra.mrb[0].mxu0 %v922
        %v1019 = vpop.f32.mrb[0].mxu0
        %v1020 = vadd.f32 %v951, %v1019
        %v1021 = vpop.f32.mrb[0].mxu0
        %1022 = vmatprep.mubr.f32.mxu0 0.0
        %1023 = vmatmul.mubr.f32.gmra.mrb[0].mxu0 %v923
        %v1024 = vpop.f32.mrb[0].mxu0
        %v1025 = vadd.f32 %v951, %v1024
        %v1026 = vpop.f32.mrb[0].mxu0
        %1027 = vmatprep.mubr.f32.mxu0 0.0
        %1028 = vmatmul.mubr.f32.gmra.mrb[0].mxu0 %v924
        %v1029 = vpop.f32.mrb[0].mxu0
        %v1030 = vadd.f32 %v951, %v1029
        %v1031 = vpop.f32.mrb[0].mxu0
        %1032 = vmatprep.mubr.f32.mxu0 0.0
        %1033 = vmatmul.mubr.f32.gmra.mrb[0].mxu0 %v925
        %v1034 = vpop.f32.mrb[0].mxu0
        %v1035 = vadd.f32 %v951, %v1034
        %v1036 = vpop.f32.mrb[0].mxu0
        %1037 = vmatprep.mubr.f32.mxu0 0.0
        %1038 = vmatmul.mubr.f32.gmra.mrb[0].mxu0 %v926
        %v1039 = vpop.f32.mrb[0].mxu0
        %v1040 = vadd.f32 %v951, %v1039
        %v1041 = vpop.f32.mrb[0].mxu0
        %1042 = vmatprep.mubr.f32.mxu0 0.0
        %1043 = vmatmul.mubr.f32.gmra.mrb[0].mxu0 %v927
        %v1044 = vpop.f32.mrb[0].mxu0
        %v1045 = vadd.f32 %v951, %v1044
        %v1046 = vpop.f32.mrb[0].mxu0
        %1047 = vmatprep.mubr.f32.mxu0 0.0
        %1048 = vmatmul.mubr.f32.gmra.mrb[0].mxu0 %v928
        %v1049 = vpop.f32.mrb[0].mxu0
        %v1050 = vadd.f32 %v951, %v1049
        %v1051 = vpop.f32.mrb[0].mxu0
        %1052 = vmatprep.mubr.f32.mxu0 0.0
        %1053 = vmatmul.mubr.f32.gmra.mrb[0].mxu0 %v929
        %v1054 = vpop.f32.mrb[0].mxu0
        %v1055 = vadd.f32 %v951, %v1054
        %v1056 = vpop.f32.mrb[0].mxu0
        %1057 = vdwg.mxu0
        %1058 = vxpose.xlu0.b32.start [1/16] %v1020, 128
        %1059 = vxpose.xlu0.b32.cont [2/16] 0.0, 128
        %1060 = vxpose.xlu0.b32.cont [3/16] 0.0, 128
        %1061 = vxpose.xlu0.b32.cont [4/16] 0.0, 128
        %1062 = vxpose.xlu0.b32.cont [5/16] 0.0, 128
        %1063 = vxpose.xlu0.b32.cont [6/16] 0.0, 128
        %1064 = vxpose.xlu0.b32.cont [7/16] 0.0, 128
        %1065 = vxpose.xlu0.b32.cont [8/16] 0.0, 128
        %1066 = vxpose.xlu0.b32.cont [9/16] 0.0, 128
        %1067 = vxpose.xlu0.b32.cont [10/16] 0.0, 128
        %1068 = vxpose.xlu0.b32.cont [11/16] 0.0, 128
        %1069 = vxpose.xlu0.b32.cont [12/16] 0.0, 128
        %1070 = vxpose.xlu0.b32.cont [13/16] 0.0, 128
        %1071 = vxpose.xlu0.b32.cont [14/16] 0.0, 128
        %1072 = vxpose.xlu0.b32.cont [15/16] 0.0, 128
        %1073 = vxpose.xlu0.b32.end [16/16] 0.0, 128
        %v1074 = vpop.trf.xlu0
        %v1075 = vpop.trf.xlu0
        %v1076 = vpop.trf.xlu0
        %v1077 = vpop.trf.xlu0
        %v1078 = vpop.trf.xlu0
        %v1079 = vpop.trf.xlu0
        %v1080 = vpop.trf.xlu0
        %v1081 = vpop.trf.xlu0
        %v1082 = vpop.trf.xlu0
        %v1083 = vpop.trf.xlu0
        %v1084 = vpop.trf.xlu0
        %v1085 = vpop.trf.xlu0
        %v1086 = vpop.trf.xlu0
        %v1087 = vpop.trf.xlu0
        %v1088 = vpop.trf.xlu0
        %v1089 = vpop.trf.xlu0
        %1090 = vxpose.xlu0.b32.start [1/16] %v1025, 128
        %1091 = vxpose.xlu0.b32.cont [2/16] 0.0, 128
        %1092 = vxpose.xlu0.b32.cont [3/16] 0.0, 128
        %1093 = vxpose.xlu0.b32.cont [4/16] 0.0, 128
        %1094 = vxpose.xlu0.b32.cont [5/16] 0.0, 128
        %1095 = vxpose.xlu0.b32.cont [6/16] 0.0, 128
        %1096 = vxpose.xlu0.b32.cont [7/16] 0.0, 128
        %1097 = vxpose.xlu0.b32.cont [8/16] 0.0, 128
        %1098 = vxpose.xlu0.b32.cont [9/16] 0.0, 128
        %1099 = vxpose.xlu0.b32.cont [10/16] 0.0, 128
        %1100 = vxpose.xlu0.b32.cont [11/16] 0.0, 128
        %1101 = vxpose.xlu0.b32.cont [12/16] 0.0, 128
        %1102 = vxpose.xlu0.b32.cont [13/16] 0.0, 128
        %1103 = vxpose.xlu0.b32.cont [14/16] 0.0, 128
        %1104 = vxpose.xlu0.b32.cont [15/16] 0.0, 128
        %1105 = vxpose.xlu0.b32.end [16/16] 0.0, 128
        %v1106 = vpop.trf.xlu0
        %v1107 = vpop.trf.xlu0
        %v1108 = vpop.trf.xlu0
        %v1109 = vpop.trf.xlu0
        %v1110 = vpop.trf.xlu0
        %v1111 = vpop.trf.xlu0
        %v1112 = vpop.trf.xlu0
        %v1113 = vpop.trf.xlu0
        %v1114 = vpop.trf.xlu0
        %v1115 = vpop.trf.xlu0
        %v1116 = vpop.trf.xlu0
        %v1117 = vpop.trf.xlu0
        %v1118 = vpop.trf.xlu0
        %v1119 = vpop.trf.xlu0
        %v1120 = vpop.trf.xlu0
        %v1121 = vpop.trf.xlu0
        %1122 = vxpose.xlu0.b32.start [1/16] %v1030, 128
        %1123 = vxpose.xlu0.b32.cont [2/16] 0.0, 128
        %1124 = vxpose.xlu0.b32.cont [3/16] 0.0, 128
        %1125 = vxpose.xlu0.b32.cont [4/16] 0.0, 128
        %1126 = vxpose.xlu0.b32.cont [5/16] 0.0, 128
        %1127 = vxpose.xlu0.b32.cont [6/16] 0.0, 128
        %1128 = vxpose.xlu0.b32.cont [7/16] 0.0, 128
        %1129 = vxpose.xlu0.b32.cont [8/16] 0.0, 128
        %1130 = vxpose.xlu0.b32.cont [9/16] 0.0, 128
        %1131 = vxpose.xlu0.b32.cont [10/16] 0.0, 128
        %1132 = vxpose.xlu0.b32.cont [11/16] 0.0, 128
        %1133 = vxpose.xlu0.b32.cont [12/16] 0.0, 128
        %1134 = vxpose.xlu0.b32.cont [13/16] 0.0, 128
        %1135 = vxpose.xlu0.b32.cont [14/16] 0.0, 128
        %1136 = vxpose.xlu0.b32.cont [15/16] 0.0, 128
        %1137 = vxpose.xlu0.b32.end [16/16] 0.0, 128
        %v1138 = vpop.trf.xlu0
        %v1139 = vpop.trf.xlu0
        %v1140 = vpop.trf.xlu0
        %v1141 = vpop.trf.xlu0
        %v1142 = vpop.trf.xlu0
        %v1143 = vpop.trf.xlu0
        %v1144 = vpop.trf.xlu0
        %v1145 = vpop.trf.xlu0
        %v1146 = vpop.trf.xlu0
        %v1147 = vpop.trf.xlu0
        %v1148 = vpop.trf.xlu0
        %v1149 = vpop.trf.xlu0
        %v1150 = vpop.trf.xlu0
        %v1151 = vpop.trf.xlu0
        %v1152 = vpop.trf.xlu0
        %v1153 = vpop.trf.xlu0
        %1154 = vxpose.xlu0.b32.start [1/16] %v1035, 128
        %1155 = vxpose.xlu0.b32.cont [2/16] 0.0, 128
        %1156 = vxpose.xlu0.b32.cont [3/16] 0.0, 128
        %1157 = vxpose.xlu0.b32.cont [4/16] 0.0, 128
        %1158 = vxpose.xlu0.b32.cont [5/16] 0.0, 128
        %1159 = vxpose.xlu0.b32.cont [6/16] 0.0, 128
        %1160 = vxpose.xlu0.b32.cont [7/16] 0.0, 128
        %1161 = vxpose.xlu0.b32.cont [8/16] 0.0, 128
        %1162 = vxpose.xlu0.b32.cont [9/16] 0.0, 128
        %1163 = vxpose.xlu0.b32.cont [10/16] 0.0, 128
        %1164 = vxpose.xlu0.b32.cont [11/16] 0.0, 128
        %1165 = vxpose.xlu0.b32.cont [12/16] 0.0, 128
        %1166 = vxpose.xlu0.b32.cont [13/16] 0.0, 128
        %1167 = vxpose.xlu0.b32.cont [14/16] 0.0, 128
        %1168 = vxpose.xlu0.b32.cont [15/16] 0.0, 128
        %1169 = vxpose.xlu0.b32.end [16/16] 0.0, 128
        %v1170 = vpop.trf.xlu0
        %v1171 = vpop.trf.xlu0
        %v1172 = vpop.trf.xlu0
        %v1173 = vpop.trf.xlu0
        %v1174 = vpop.trf.xlu0
        %v1175 = vpop.trf.xlu0
        %v1176 = vpop.trf.xlu0
        %v1177 = vpop.trf.xlu0
        %v1178 = vpop.trf.xlu0
        %v1179 = vpop.trf.xlu0
        %v1180 = vpop.trf.xlu0
        %v1181 = vpop.trf.xlu0
        %v1182 = vpop.trf.xlu0
        %v1183 = vpop.trf.xlu0
        %v1184 = vpop.trf.xlu0
        %v1185 = vpop.trf.xlu0
        %1186 = vxpose.xlu0.b32.start [1/16] %v1040, 128
        %1187 = vxpose.xlu0.b32.cont [2/16] 0.0, 128
        %1188 = vxpose.xlu0.b32.cont [3/16] 0.0, 128
        %1189 = vxpose.xlu0.b32.cont [4/16] 0.0, 128
        %1190 = vxpose.xlu0.b32.cont [5/16] 0.0, 128
        %1191 = vxpose.xlu0.b32.cont [6/16] 0.0, 128
        %1192 = vxpose.xlu0.b32.cont [7/16] 0.0, 128
        %1193 = vxpose.xlu0.b32.cont [8/16] 0.0, 128
        %1194 = vxpose.xlu0.b32.cont [9/16] 0.0, 128
        %1195 = vxpose.xlu0.b32.cont [10/16] 0.0, 128
        %1196 = vxpose.xlu0.b32.cont [11/16] 0.0, 128
        %1197 = vxpose.xlu0.b32.cont [12/16] 0.0, 128
        %1198 = vxpose.xlu0.b32.cont [13/16] 0.0, 128
        %1199 = vxpose.xlu0.b32.cont [14/16] 0.0, 128
        %1200 = vxpose.xlu0.b32.cont [15/16] 0.0, 128
        %1201 = vxpose.xlu0.b32.end [16/16] 0.0, 128
        %v1202 = vpop.trf.xlu0
        %v1203 = vpop.trf.xlu0
        %v1204 = vpop.trf.xlu0
        %v1205 = vpop.trf.xlu0
        %v1206 = vpop.trf.xlu0
        %v1207 = vpop.trf.xlu0
        %v1208 = vpop.trf.xlu0
        %v1209 = vpop.trf.xlu0
        %v1210 = vpop.trf.xlu0
        %v1211 = vpop.trf.xlu0
        %v1212 = vpop.trf.xlu0
        %v1213 = vpop.trf.xlu0
        %v1214 = vpop.trf.xlu0
        %v1215 = vpop.trf.xlu0
        %v1216 = vpop.trf.xlu0
        %v1217 = vpop.trf.xlu0
        %1218 = vxpose.xlu0.b32.start [1/16] %v1045, 128
        %1219 = vxpose.xlu0.b32.cont [2/16] 0.0, 128
        %1220 = vxpose.xlu0.b32.cont [3/16] 0.0, 128
        %1221 = vxpose.xlu0.b32.cont [4/16] 0.0, 128
        %1222 = vxpose.xlu0.b32.cont [5/16] 0.0, 128
        %1223 = vxpose.xlu0.b32.cont [6/16] 0.0, 128
        %1224 = vxpose.xlu0.b32.cont [7/16] 0.0, 128
        %1225 = vxpose.xlu0.b32.cont [8/16] 0.0, 128
        %1226 = vxpose.xlu0.b32.cont [9/16] 0.0, 128
        %1227 = vxpose.xlu0.b32.cont [10/16] 0.0, 128
        %1228 = vxpose.xlu0.b32.cont [11/16] 0.0, 128
        %1229 = vxpose.xlu0.b32.cont [12/16] 0.0, 128
        %1230 = vxpose.xlu0.b32.cont [13/16] 0.0, 128
        %1231 = vxpose.xlu0.b32.cont [14/16] 0.0, 128
        %1232 = vxpose.xlu0.b32.cont [15/16] 0.0, 128
        %1233 = vxpose.xlu0.b32.end [16/16] 0.0, 128
        %v1234 = vpop.trf.xlu0
        %v1235 = vpop.trf.xlu0
        %v1236 = vpop.trf.xlu0
        %v1237 = vpop.trf.xlu0
        %v1238 = vpop.trf.xlu0
        %v1239 = vpop.trf.xlu0
        %v1240 = vpop.trf.xlu0
        %v1241 = vpop.trf.xlu0
        %v1242 = vpop.trf.xlu0
        %v1243 = vpop.trf.xlu0
        %v1244 = vpop.trf.xlu0
        %v1245 = vpop.trf.xlu0
        %v1246 = vpop.trf.xlu0
        %v1247 = vpop.trf.xlu0
        %v1248 = vpop.trf.xlu0
        %v1249 = vpop.trf.xlu0
        %1250 = vxpose.xlu0.b32.start [1/16] %v1050, 128
        %1251 = vxpose.xlu0.b32.cont [2/16] 0.0, 128
        %1252 = vxpose.xlu0.b32.cont [3/16] 0.0, 128
        %1253 = vxpose.xlu0.b32.cont [4/16] 0.0, 128
        %1254 = vxpose.xlu0.b32.cont [5/16] 0.0, 128
        %1255 = vxpose.xlu0.b32.cont [6/16] 0.0, 128
        %1256 = vxpose.xlu0.b32.cont [7/16] 0.0, 128
        %1257 = vxpose.xlu0.b32.cont [8/16] 0.0, 128
        %1258 = vxpose.xlu0.b32.cont [9/16] 0.0, 128
        %1259 = vxpose.xlu0.b32.cont [10/16] 0.0, 128
        %1260 = vxpose.xlu0.b32.cont [11/16] 0.0, 128
        %1261 = vxpose.xlu0.b32.cont [12/16] 0.0, 128
        %1262 = vxpose.xlu0.b32.cont [13/16] 0.0, 128
        %1263 = vxpose.xlu0.b32.cont [14/16] 0.0, 128
        %1264 = vxpose.xlu0.b32.cont [15/16] 0.0, 128
        %1265 = vxpose.xlu0.b32.end [16/16] 0.0, 128
        %v1266 = vpop.trf.xlu0
        %v1267 = vpop.trf.xlu0
        %v1268 = vpop.trf.xlu0
        %v1269 = vpop.trf.xlu0
        %v1270 = vpop.trf.xlu0
        %v1271 = vpop.trf.xlu0
        %v1272 = vpop.trf.xlu0
        %v1273 = vpop.trf.xlu0
        %v1274 = vpop.trf.xlu0
        %v1275 = vpop.trf.xlu0
        %v1276 = vpop.trf.xlu0
        %v1277 = vpop.trf.xlu0
        %v1278 = vpop.trf.xlu0
        %v1279 = vpop.trf.xlu0
        %v1280 = vpop.trf.xlu0
        %v1281 = vpop.trf.xlu0
        %1282 = vxpose.xlu0.b32.start [1/16] %v1055, 128
        %1283 = vxpose.xlu0.b32.cont [2/16] 0.0, 128
        %1284 = vxpose.xlu0.b32.cont [3/16] 0.0, 128
        %1285 = vxpose.xlu0.b32.cont [4/16] 0.0, 128
        %1286 = vxpose.xlu0.b32.cont [5/16] 0.0, 128
        %1287 = vxpose.xlu0.b32.cont [6/16] 0.0, 128
        %1288 = vxpose.xlu0.b32.cont [7/16] 0.0, 128
        %1289 = vxpose.xlu0.b32.cont [8/16] 0.0, 128
        %1290 = vxpose.xlu0.b32.cont [9/16] 0.0, 128
        %1291 = vxpose.xlu0.b32.cont [10/16] 0.0, 128
        %1292 = vxpose.xlu0.b32.cont [11/16] 0.0, 128
        %1293 = vxpose.xlu0.b32.cont [12/16] 0.0, 128
        %1294 = vxpose.xlu0.b32.cont [13/16] 0.0, 128
        %1295 = vxpose.xlu0.b32.cont [14/16] 0.0, 128
        %1296 = vxpose.xlu0.b32.cont [15/16] 0.0, 128
        %1297 = vxpose.xlu0.b32.end [16/16] 0.0, 128
        %v1298 = vpop.trf.xlu0
        %v1299 = vpop.trf.xlu0
        %v1300 = vpop.trf.xlu0
        %v1301 = vpop.trf.xlu0
        %v1302 = vpop.trf.xlu0
        %v1303 = vpop.trf.xlu0
        %v1304 = vpop.trf.xlu0
        %v1305 = vpop.trf.xlu0
        %v1306 = vpop.trf.xlu0
        %v1307 = vpop.trf.xlu0
        %v1308 = vpop.trf.xlu0
        %v1309 = vpop.trf.xlu0
        %v1310 = vpop.trf.xlu0
        %v1311 = vpop.trf.xlu0
        %v1312 = vpop.trf.xlu0
        %v1313 = vpop.trf.xlu0
        %v1314 = vld [vmem:[#allocation3] sm:$0xff]
        %v1316 = vcombine.high %v1314, %v1314
        %v1318 = vunpack.c.l.s4 1966171168
        %v1319 = vunpack.c.0.s8 %v1318
        %v1320 = vlaneseq
        %v1321 = vshrl.u32 %v1320, 7
        %v1322 = vsub.s32 %v1319, %v1321
        %v1323 = vrot.slane %v1314, %v1322
        %v1325 = vunpack.c.l.s4 1966171168
        %v1326 = vunpack.c.0.s8 %v1325
        %v1327 = vlaneseq
        %v1328 = vshrl.u32 %v1327, 7
        %v1329 = vsub.s32 %v1326, %v1328
        %v1330 = vrot.slane %v1316, %v1329
        %v1331 = vcombine.high %v1323, %v1323
        %v1332 = vcombine.high %v1330, %v1330
        %v1334 = vunpack.c.l.s4 1966171168
        %v1335 = vunpack.c.0.s8 %v1334
        %v1336 = vlaneseq
        %v1337 = vshrl.u32 %v1336, 7
        %v1338 = vsub.s32 %v1335, %v1337
        %v1339 = vrot.slane %v1323, %v1338
        %v1341 = vunpack.c.l.s4 1966171168
        %v1342 = vunpack.c.0.s8 %v1341
        %v1343 = vlaneseq
        %v1344 = vshrl.u32 %v1343, 7
        %v1345 = vsub.s32 %v1342, %v1344
        %v1346 = vrot.slane %v1330, %v1345
        %v1348 = vunpack.c.l.s4 1966171168
        %v1349 = vunpack.c.0.s8 %v1348
        %v1350 = vlaneseq
        %v1351 = vshrl.u32 %v1350, 7
        %v1352 = vsub.s32 %v1349, %v1351
        %v1353 = vrot.slane %v1331, %v1352
        %v1355 = vunpack.c.l.s4 1966171168
        %v1356 = vunpack.c.0.s8 %v1355
        %v1357 = vlaneseq
        %v1358 = vshrl.u32 %v1357, 7
        %v1359 = vsub.s32 %v1356, %v1358
        %v1360 = vrot.slane %v1332, %v1359
        %v1361 = vcombine.high %v1339, %v1339
        %v1362 = vcombine.high %v1346, %v1346
        %v1363 = vcombine.high %v1353, %v1353
        %v1364 = vcombine.high %v1360, %v1360
        %v1365 = vlaneseq
        %v1366 = vshrl.u32 %v1365, 7
        %v1367 = vsub.s32 0, %v1366
        %v1368 = vrot.slane %v1339, %v1367
        %v1369 = vlaneseq
        %v1370 = vshrl.u32 %v1369, 7
        %v1371 = vsub.s32 0, %v1370
        %v1372 = vrot.slane %v1353, %v1371
        %v1373 = vlaneseq
        %v1374 = vshrl.u32 %v1373, 7
        %v1375 = vsub.s32 0, %v1374
        %v1376 = vrot.slane %v1361, %v1375
        %v1377 = vlaneseq
        %v1378 = vshrl.u32 %v1377, 7
        %v1379 = vsub.s32 0, %v1378
        %v1380 = vrot.slane %v1363, %v1379
        %v1381 = vlaneseq
        %v1382 = vshrl.u32 %v1381, 7
        %v1383 = vsub.s32 0, %v1382
        %v1384 = vrot.slane %v1346, %v1383
        %v1385 = vlaneseq
        %v1386 = vshrl.u32 %v1385, 7
        %v1387 = vsub.s32 0, %v1386
        %v1388 = vrot.slane %v1360, %v1387
        %v1389 = vlaneseq
        %v1390 = vshrl.u32 %v1389, 7
        %v1391 = vsub.s32 0, %v1390
        %v1392 = vrot.slane %v1362, %v1391
        %v1393 = vlaneseq
        %v1394 = vshrl.u32 %v1393, 7
        %v1395 = vsub.s32 0, %v1394
        %v1396 = vrot.slane %v1364, %v1395
        %v1405 = vadd.f32 %v1074, %v1368
        %v1406 = vadd.f32 %v1106, %v1372
        %v1407 = vadd.f32 %v1138, %v1376
        %v1408 = vadd.f32 %v1170, %v1380
        %v1409 = vadd.f32 %v1202, %v1384
        %v1410 = vadd.f32 %v1234, %v1388
        %v1411 = vadd.f32 %v1266, %v1392
        %v1412 = vadd.f32 %v1298, %v1396
        %vm1413 = vcmask 60416
        %v1414 = vsel %vm1413, %v1405, -inf
        %1415 = vmax.xlane.f32.xlu0 %v1414
        %v1416 = vpop.xlane.xlu0 %1415
        %v1417 = vsel %vm1413, %v1406, -inf
        %1418 = vmax.xlane.f32.xlu0 %v1417
        %v1419 = vpop.xlane.xlu0 %1418
        %v1420 = vsel %vm1413, %v1407, -inf
        %1421 = vmax.xlane.f32.xlu0 %v1420
        %v1422 = vpop.xlane.xlu0 %1421
        %v1423 = vsel %vm1413, %v1408, -inf
        %1424 = vmax.xlane.f32.xlu0 %v1423
        %v1425 = vpop.xlane.xlu0 %1424
        %v1426 = vsel %vm1413, %v1409, -inf
        %1427 = vmax.xlane.f32.xlu0 %v1426
        %v1428 = vpop.xlane.xlu0 %1427
        %v1429 = vsel %vm1413, %v1410, -inf
        %1430 = vmax.xlane.f32.xlu0 %v1429
        %v1431 = vpop.xlane.xlu0 %1430
        %v1432 = vsel %vm1413, %v1411, -inf
        %1433 = vmax.xlane.f32.xlu0 %v1432
        %v1434 = vpop.xlane.xlu0 %1433
        %v1435 = vsel %vm1413, %v1412, -inf
        %1436 = vmax.xlane.f32.xlu0 %v1435
        %v1437 = vpop.xlane.xlu0 %1436
        %v1438 = vsub.f32 %v1405, %v1416
        %v1439 = vsub.f32 %v1406, %v1419
        %v1440 = vsub.f32 %v1407, %v1422
        %v1441 = vsub.f32 %v1408, %v1425
        %v1442 = vsub.f32 %v1409, %v1428
        %v1443 = vsub.f32 %v1410, %v1431
        %v1444 = vsub.f32 %v1411, %v1434
        %v1445 = vsub.f32 %v1412, %v1437
        %v1446 = vmul.f32 %v1438, 1.442695
        %v1447 = vpow.pop %v1446
        %v1448 = vmul.f32 %v1439, 1.442695
        %v1449 = vpow.pop %v1448
        %v1450 = vmul.f32 %v1440, 1.442695
        %v1451 = vpow.pop %v1450
        %v1452 = vmul.f32 %v1441, 1.442695
        %v1453 = vpow.pop %v1452
        %v1454 = vmul.f32 %v1442, 1.442695
        %v1455 = vpow.pop %v1454
        %v1456 = vmul.f32 %v1443, 1.442695
        %v1457 = vpow.pop %v1456
        %v1458 = vmul.f32 %v1444, 1.442695
        %v1459 = vpow.pop %v1458
        %v1460 = vmul.f32 %v1445, 1.442695
        %v1461 = vpow.pop %v1460
        %v1462 = vsel %vm1413, %v1447, 0.0
        %1463 = vadd.xlane.f32.xlu0 %v1462
        %v1464 = vpop.xlane.xlu0 %1463
        %v1465 = vsel %vm1413, %v1449, 0.0
        %1466 = vadd.xlane.f32.xlu0 %v1465
        %v1467 = vpop.xlane.xlu0 %1466
        %v1468 = vsel %vm1413, %v1451, 0.0
        %1469 = vadd.xlane.f32.xlu0 %v1468
        %v1470 = vpop.xlane.xlu0 %1469
        %v1471 = vsel %vm1413, %v1453, 0.0
        %1472 = vadd.xlane.f32.xlu0 %v1471
        %v1473 = vpop.xlane.xlu0 %1472
        %v1474 = vsel %vm1413, %v1455, 0.0
        %1475 = vadd.xlane.f32.xlu0 %v1474
        %v1476 = vpop.xlane.xlu0 %1475
        %v1477 = vsel %vm1413, %v1457, 0.0
        %1478 = vadd.xlane.f32.xlu0 %v1477
        %v1479 = vpop.xlane.xlu0 %1478
        %v1480 = vsel %vm1413, %v1459, 0.0
        %1481 = vadd.xlane.f32.xlu0 %v1480
        %v1482 = vpop.xlane.xlu0 %1481
        %v1483 = vsel %vm1413, %v1461, 0.0
        %1484 = vadd.xlane.f32.xlu0 %v1483
        %v1485 = vpop.xlane.xlu0 %1484
        %v1486 = vrcp.pop %v1464
        %v1487 = vrcp.pop %v1467
        %v1488 = vrcp.pop %v1470
        %v1489 = vrcp.pop %v1473
        %v1490 = vrcp.pop %v1476
        %v1491 = vrcp.pop %v1479
        %v1492 = vrcp.pop %v1482
        %v1493 = vrcp.pop %v1485
        %v1494 = vmul.f32 %v1447, %v1486
        %v1495 = vmul.f32 %v1449, %v1487
        %v1496 = vmul.f32 %v1451, %v1488
        %v1497 = vmul.f32 %v1453, %v1489
        %v1498 = vmul.f32 %v1455, %v1490
        %v1499 = vmul.f32 %v1457, %v1491
        %v1500 = vmul.f32 %v1459, %v1492
        %v1501 = vmul.f32 %v1461, %v1493
        %v1502 = vld [vmem:[%s7] sm:$0xf]
        %v1503 = vld [vmem:[%s7 + $0x4] sm:$0xf]
        %v1504 = vld [vmem:[%s7 + $0x8] sm:$0xf]
        %v1505 = vld [vmem:[%s7 + $0xc] sm:$0xf]
        %v1506 = vld [vmem:[%s8] sm:$0x1]
        %v1508 = vlaneseq
        %v1509 = vshrl.u32 %v1508, 7
        %v1510 = vsub.s32 0, %v1509
        %v1511 = vrot.slane %v1506, %v1510
        %v1517 = vunpack.c.l.b16 %v1502
        %v1518 = vunpack.c.l.b16 %v1503
        %v1519 = vunpack.c.l.b16 %v1504
        %v1520 = vunpack.c.l.b16 %v1505
        %v1521 = vpack.c.b16 %v1518, %v1517
        %v1522 = vpack.c.b16 %v1520, %v1519
        %1525 = vmatprep.subr.bf16.mxu0 0
        %1526 = vmatpush1.bf16.msra.mxu0 %v1521
        %1527 = vmatprep.subr.bf16.mxu0 0
        %1528 = vmatpush1.bf16.msra.mxu0 %v1522
        %1529 = vmatprep.subr.bf16.mxu0 0
        %1530 = vmatpush1.bf16.msra.mxu0 0
        %1531 = vmatprep.subr.bf16.mxu0 0
        %1532 = vmatpush1.bf16.msra.mxu0 0
        %1533 = vmatprep.subr.bf16.mxu0 0
        %1534 = vmatpush1.bf16.msra.mxu0 0
        %1535 = vmatprep.subr.bf16.mxu0 0
        %1536 = vmatpush1.bf16.msra.mxu0 0
        %1537 = vmatprep.subr.bf16.mxu0 0
        %1538 = vmatpush1.bf16.msra.mxu0 0
        %1539 = vmatprep.subr.bf16.mxu0 0
        %1540 = vmatpush1.bf16.msra.mxu0 0
        %1541 = vmatprep.subr.bf16.mxu0 0
        %1542 = vmatpush1.bf16.msra.mxu0 0
        %1543 = vmatprep.subr.bf16.mxu0 0
        %1544 = vmatpush1.bf16.msra.mxu0 0
        %1545 = vmatprep.subr.bf16.mxu0 0
        %1546 = vmatpush1.bf16.msra.mxu0 0
        %1547 = vmatprep.subr.bf16.mxu0 0
        %1548 = vmatpush1.bf16.msra.mxu0 0
        %1549 = vmatprep.subr.bf16.mxu0 0
        %1550 = vmatpush1.bf16.msra.mxu0 0
        %1551 = vmatprep.subr.bf16.mxu0 0
        %1552 = vmatpush1.bf16.msra.mxu0 0
        %1553 = vmatprep.subr.bf16.mxu0 0
        %1554 = vmatpush1.bf16.msra.mxu0 0
        %1555 = vmatprep.subr.bf16.mxu0 0
        %1556 = vmatpush1.bf16.msra.mxu0 0
        %1557 = vmatprep.mubr.bf16.mxu0 0
        %1558 = vmatmul.mubr.bf16.gmra.mrb[0].mxu0 %v647
        %v1559 = vpop.f32.mrb[0].mxu0
        %v1560 = vadd.f32 %v1511, %v1559
        %v1561 = vpop.f32.mrb[0].mxu0
        %v1562 = vpop.f32.mrb[0].mxu0
        %v1563 = vpop.f32.mrb[0].mxu0
        %1564 = vdwg.mxu0
        %v1573 = vrot.slane %v1495, 7
        %vm1574 = vcmask 1041409
        %v1575 = vsel %vm1574, %v1573, %v1494
        %v1576 = vrot.slane %v1496, 6
        %vm1577 = vcmask 1042434
        %v1578 = vsel %vm1577, %v1576, %v1575
        %v1579 = vrot.slane %v1497, 5
        %vm1580 = vcmask 1043459
        %v1581 = vsel %vm1580, %v1579, %v1578
        %v1582 = vrot.slane %v1498, 4
        %vm1583 = vcmask 1044484
        %v1584 = vsel %vm1583, %v1582, %v1581
        %v1585 = vrot.slane %v1499, 3
        %vm1586 = vcmask 1045509
        %v1587 = vsel %vm1586, %v1585, %v1584
        %v1588 = vrot.slane %v1500, 2
        %vm1589 = vcmask 1046534
        %v1590 = vsel %vm1589, %v1588, %v1587
        %v1591 = vrot.slane %v1501, 1
        %vm1592 = vcmask 1047559
        %v1593 = vsel %vm1592, %v1591, %v1590
        %vm1594 = vcmask 64512
        %v1595 = vsel %vm1594, %v1593, 0
        %1597 = vmatprep.subr.mxu0 0.0
        %1598 = vmatpush1.msra.mxu0 %v1560
        %1599 = vmatprep.subr.mxu0 0.0
        %1600 = vmatpush1.msra.mxu0 0.0
        %1601 = vmatprep.subr.mxu0 0.0
        %1602 = vmatpush1.msra.mxu0 0.0
        %1603 = vmatprep.subr.mxu0 0.0
        %1604 = vmatpush1.msra.mxu0 0.0
        %1605 = vmatprep.subr.mxu0 0.0
        %1606 = vmatpush1.msra.mxu0 0.0
        %1607 = vmatprep.subr.mxu0 0.0
        %1608 = vmatpush1.msra.mxu0 0.0
        %1609 = vmatprep.subr.mxu0 0.0
        %1610 = vmatpush1.msra.mxu0 0.0
        %1611 = vmatprep.subr.mxu0 0.0
        %1612 = vmatpush1.msra.mxu0 0.0
        %1613 = vmatprep.subr.mxu0 0.0
        %1614 = vmatpush1.msra.mxu0 0.0
        %1615 = vmatprep.subr.mxu0 0.0
        %1616 = vmatpush1.msra.mxu0 0.0
        %1617 = vmatprep.subr.mxu0 0.0
        %1618 = vmatpush1.msra.mxu0 0.0
        %1619 = vmatprep.subr.mxu0 0.0
        %1620 = vmatpush1.msra.mxu0 0.0
        %1621 = vmatprep.subr.mxu0 0.0
        %1622 = vmatpush1.msra.mxu0 0.0
        %1623 = vmatprep.subr.mxu0 0.0
        %1624 = vmatpush1.msra.mxu0 0.0
        %1625 = vmatprep.subr.mxu0 0.0
        %1626 = vmatpush1.msra.mxu0 0.0
        %1627 = vmatprep.subr.mxu0 0.0
        %1628 = vmatpush1.msra.mxu0 0.0
        %1629 = vmatprep.subr.mxu0 0.0
        %1630 = vmatpush1.msra.mxu0 0.0
        %1631 = vmatprep.subr.mxu0 0.0
        %1632 = vmatpush1.msra.mxu0 0.0
        %1633 = vmatprep.subr.mxu0 0.0
        %1634 = vmatpush1.msra.mxu0 0.0
        %1635 = vmatprep.subr.mxu0 0.0
        %1636 = vmatpush1.msra.mxu0 0.0
        %1637 = vmatprep.subr.mxu0 0.0
        %1638 = vmatpush1.msra.mxu0 0.0
        %1639 = vmatprep.subr.mxu0 0.0
        %1640 = vmatpush1.msra.mxu0 0.0
        %1641 = vmatprep.subr.mxu0 0.0
        %1642 = vmatpush1.msra.mxu0 0.0
        %1643 = vmatprep.subr.mxu0 0.0
        %1644 = vmatpush1.msra.mxu0 0.0
        %1645 = vmatprep.subr.mxu0 0.0
        %1646 = vmatpush1.msra.mxu0 0.0
        %1647 = vmatprep.subr.mxu0 0.0
        %1648 = vmatpush1.msra.mxu0 0.0
        %1649 = vmatprep.subr.mxu0 0.0
        %1650 = vmatpush1.msra.mxu0 0.0
        %1651 = vmatprep.subr.mxu0 0.0
        %1652 = vmatpush1.msra.mxu0 0.0
        %1653 = vmatprep.subr.mxu0 0.0
        %1654 = vmatpush1.msra.mxu0 0.0
        %1655 = vmatprep.subr.mxu0 0.0
        %1656 = vmatpush1.msra.mxu0 0.0
        %1657 = vmatprep.subr.mxu0 0.0
        %1658 = vmatpush1.msra.mxu0 0.0
        %1659 = vmatprep.subr.mxu0 0.0
        %1660 = vmatpush1.msra.mxu0 0.0
        %1661 = vmatprep.mubr.f32.mxu0 0.0
        %1662 = vmatmul.mubr.f32.gmra.mrb[0].mxu0 %v1595
        %v1663 = vpop.f32.mrb[0].mxu0
        %v1664 = vadd.f32 0.0, %v1663
        %v1665 = vpop.f32.mrb[0].mxu0
        %1666 = vdwg.mxu0
        %v1667 = vrot.slane %v1494, 1
        %v1668 = vsel %vm1574, %v1495, %v1667
        %v1669 = vrot.slane %v1496, 7
        %v1670 = vsel %vm1577, %v1669, %v1668
        %v1671 = vrot.slane %v1497, 6
        %v1672 = vsel %vm1580, %v1671, %v1670
        %v1673 = vrot.slane %v1498, 5
        %v1674 = vsel %vm1583, %v1673, %v1672
        %v1675 = vrot.slane %v1499, 4
        %v1676 = vsel %vm1586, %v1675, %v1674
        %v1677 = vrot.slane %v1500, 3
        %v1678 = vsel %vm1589, %v1677, %v1676
        %v1679 = vrot.slane %v1501, 2
        %v1680 = vsel %vm1592, %v1679, %v1678
        %1682 = vrot.lane.b32.xlu0 %v1560, 120
        %v1683 = vpop.permute.xlu0 %1682
        %v1685 = vsel %vm1594, %v1680, 0
        %1687 = vmatprep.subr.mxu0 0.0
        %1688 = vmatpush1.msra.mxu0 %v1683
        %1689 = vmatprep.subr.mxu0 0.0
        %1690 = vmatpush1.msra.mxu0 0.0
        %1691 = vmatprep.subr.mxu0 0.0
        %1692 = vmatpush1.msra.mxu0 0.0
        %1693 = vmatprep.subr.mxu0 0.0
        %1694 = vmatpush1.msra.mxu0 0.0
        %1695 = vmatprep.subr.mxu0 0.0
        %1696 = vmatpush1.msra.mxu0 0.0
        %1697 = vmatprep.subr.mxu0 0.0
        %1698 = vmatpush1.msra.mxu0 0.0
        %1699 = vmatprep.subr.mxu0 0.0
        %1700 = vmatpush1.msra.mxu0 0.0
        %1701 = vmatprep.subr.mxu0 0.0
        %1702 = vmatpush1.msra.mxu0 0.0
        %1703 = vmatprep.subr.mxu0 0.0
        %1704 = vmatpush1.msra.mxu0 0.0
        %1705 = vmatprep.subr.mxu0 0.0
        %1706 = vmatpush1.msra.mxu0 0.0
        %1707 = vmatprep.subr.mxu0 0.0
        %1708 = vmatpush1.msra.mxu0 0.0
        %1709 = vmatprep.subr.mxu0 0.0
        %1710 = vmatpush1.msra.mxu0 0.0
        %1711 = vmatprep.subr.mxu0 0.0
        %1712 = vmatpush1.msra.mxu0 0.0
        %1713 = vmatprep.subr.mxu0 0.0
        %1714 = vmatpush1.msra.mxu0 0.0
        %1715 = vmatprep.subr.mxu0 0.0
        %1716 = vmatpush1.msra.mxu0 0.0
        %1717 = vmatprep.subr.mxu0 0.0
        %1718 = vmatpush1.msra.mxu0 0.0
        %1719 = vmatprep.subr.mxu0 0.0
        %1720 = vmatpush1.msra.mxu0 0.0
        %1721 = vmatprep.subr.mxu0 0.0
        %1722 = vmatpush1.msra.mxu0 0.0
        %1723 = vmatprep.subr.mxu0 0.0
        %1724 = vmatpush1.msra.mxu0 0.0
        %1725 = vmatprep.subr.mxu0 0.0
        %1726 = vmatpush1.msra.mxu0 0.0
        %1727 = vmatprep.subr.mxu0 0.0
        %1728 = vmatpush1.msra.mxu0 0.0
        %1729 = vmatprep.subr.mxu0 0.0
        %1730 = vmatpush1.msra.mxu0 0.0
        %1731 = vmatprep.subr.mxu0 0.0
        %1732 = vmatpush1.msra.mxu0 0.0
        %1733 = vmatprep.subr.mxu0 0.0
        %1734 = vmatpush1.msra.mxu0 0.0
        %1735 = vmatprep.subr.mxu0 0.0
        %1736 = vmatpush1.msra.mxu0 0.0
        %1737 = vmatprep.subr.mxu0 0.0
        %1738 = vmatpush1.msra.mxu0 0.0
        %1739 = vmatprep.subr.mxu0 0.0
        %1740 = vmatpush1.msra.mxu0 0.0
        %1741 = vmatprep.subr.mxu0 0.0
        %1742 = vmatpush1.msra.mxu0 0.0
        %1743 = vmatprep.subr.mxu0 0.0
        %1744 = vmatpush1.msra.mxu0 0.0
        %1745 = vmatprep.subr.mxu0 0.0
        %1746 = vmatpush1.msra.mxu0 0.0
        %1747 = vmatprep.subr.mxu0 0.0
        %1748 = vmatpush1.msra.mxu0 0.0
        %1749 = vmatprep.subr.mxu0 0.0
        %1750 = vmatpush1.msra.mxu0 0.0
        %1751 = vmatprep.mubr.f32.mxu0 0.0
        %1752 = vmatmul.mubr.f32.gmra.mrb[0].mxu0 %v1685
        %v1753 = vpop.f32.mrb[0].mxu0
        %v1754 = vadd.f32 0.0, %v1753
        %v1755 = vpop.f32.mrb[0].mxu0
        %1756 = vdwg.mxu0
        %v1757 = vrot.slane %v1494, 2
        %v1758 = vrot.slane %v1495, 1
        %v1759 = vsel %vm1574, %v1758, %v1757
        %v1760 = vsel %vm1577, %v1496, %v1759
        %v1761 = vrot.slane %v1497, 7
        %v1762 = vsel %vm1580, %v1761, %v1760
        %v1763 = vrot.slane %v1498, 6
        %v1764 = vsel %vm1583, %v1763, %v1762
        %v1765 = vrot.slane %v1499, 5
        %v1766 = vsel %vm1586, %v1765, %v1764
        %v1767 = vrot.slane %v1500, 4
        %v1768 = vsel %vm1589, %v1767, %v1766
        %v1769 = vrot.slane %v1501, 3
        %v1770 = vsel %vm1592, %v1769, %v1768
        %1771 = vrot.lane.b32.xlu0 %v1560, 112
        %v1772 = vpop.permute.xlu0 %1771
        %v1774 = vsel %vm1594, %v1770, 0
        %1776 = vmatprep.subr.mxu0 0.0
        %1777 = vmatpush1.msra.mxu0 %v1772
        %1778 = vmatprep.subr.mxu0 0.0
        %1779 = vmatpush1.msra.mxu0 0.0
        %1780 = vmatprep.subr.mxu0 0.0
        %1781 = vmatpush1.msra.mxu0 0.0
        %1782 = vmatprep.subr.mxu0 0.0
        %1783 = vmatpush1.msra.mxu0 0.0
        %1784 = vmatprep.subr.mxu0 0.0
        %1785 = vmatpush1.msra.mxu0 0.0
        %1786 = vmatprep.subr.mxu0 0.0
        %1787 = vmatpush1.msra.mxu0 0.0
        %1788 = vmatprep.subr.mxu0 0.0
        %1789 = vmatpush1.msra.mxu0 0.0
        %1790 = vmatprep.subr.mxu0 0.0
        %1791 = vmatpush1.msra.mxu0 0.0
        %1792 = vmatprep.subr.mxu0 0.0
        %1793 = vmatpush1.msra.mxu0 0.0
        %1794 = vmatprep.subr.mxu0 0.0
        %1795 = vmatpush1.msra.mxu0 0.0
        %1796 = vmatprep.subr.mxu0 0.0
        %1797 = vmatpush1.msra.mxu0 0.0
        %1798 = vmatprep.subr.mxu0 0.0
        %1799 = vmatpush1.msra.mxu0 0.0
        %1800 = vmatprep.subr.mxu0 0.0
        %1801 = vmatpush1.msra.mxu0 0.0
        %1802 = vmatprep.subr.mxu0 0.0
        %1803 = vmatpush1.msra.mxu0 0.0
        %1804 = vmatprep.subr.mxu0 0.0
        %1805 = vmatpush1.msra.mxu0 0.0
        %1806 = vmatprep.subr.mxu0 0.0
        %1807 = vmatpush1.msra.mxu0 0.0
        %1808 = vmatprep.subr.mxu0 0.0
        %1809 = vmatpush1.msra.mxu0 0.0
        %1810 = vmatprep.subr.mxu0 0.0
        %1811 = vmatpush1.msra.mxu0 0.0
        %1812 = vmatprep.subr.mxu0 0.0
        %1813 = vmatpush1.msra.mxu0 0.0
        %1814 = vmatprep.subr.mxu0 0.0
        %1815 = vmatpush1.msra.mxu0 0.0
        %1816 = vmatprep.subr.mxu0 0.0
        %1817 = vmatpush1.msra.mxu0 0.0
        %1818 = vmatprep.subr.mxu0 0.0
        %1819 = vmatpush1.msra.mxu0 0.0
        %1820 = vmatprep.subr.mxu0 0.0
        %1821 = vmatpush1.msra.mxu0 0.0
        %1822 = vmatprep.subr.mxu0 0.0
        %1823 = vmatpush1.msra.mxu0 0.0
        %1824 = vmatprep.subr.mxu0 0.0
        %1825 = vmatpush1.msra.mxu0 0.0
        %1826 = vmatprep.subr.mxu0 0.0
        %1827 = vmatpush1.msra.mxu0 0.0
        %1828 = vmatprep.subr.mxu0 0.0
        %1829 = vmatpush1.msra.mxu0 0.0
        %1830 = vmatprep.subr.mxu0 0.0
        %1831 = vmatpush1.msra.mxu0 0.0
        %1832 = vmatprep.subr.mxu0 0.0
        %1833 = vmatpush1.msra.mxu0 0.0
        %1834 = vmatprep.subr.mxu0 0.0
        %1835 = vmatpush1.msra.mxu0 0.0
        %1836 = vmatprep.subr.mxu0 0.0
        %1837 = vmatpush1.msra.mxu0 0.0
        %1838 = vmatprep.subr.mxu0 0.0
        %1839 = vmatpush1.msra.mxu0 0.0
        %1840 = vmatprep.mubr.f32.mxu0 0.0
        %1841 = vmatmul.mubr.f32.gmra.mrb[0].mxu0 %v1774
        %v1842 = vpop.f32.mrb[0].mxu0
        %v1843 = vadd.f32 0.0, %v1842
        %v1844 = vpop.f32.mrb[0].mxu0
        %1845 = vdwg.mxu0
        %v1846 = vrot.slane %v1494, 3
        %v1847 = vrot.slane %v1495, 2
        %v1848 = vsel %vm1574, %v1847, %v1846
        %v1849 = vrot.slane %v1496, 1
        %v1850 = vsel %vm1577, %v1849, %v1848
        %v1851 = vsel %vm1580, %v1497, %v1850
        %v1852 = vrot.slane %v1498, 7
        %v1853 = vsel %vm1583, %v1852, %v1851
        %v1854 = vrot.slane %v1499, 6
        %v1855 = vsel %vm1586, %v1854, %v1853
        %v1856 = vrot.slane %v1500, 5
        %v1857 = vsel %vm1589, %v1856, %v1855
        %v1858 = vrot.slane %v1501, 4
        %v1859 = vsel %vm1592, %v1858, %v1857
        %1860 = vrot.lane.b32.xlu0 %v1560, 104
        %v1861 = vpop.permute.xlu0 %1860
        %v1863 = vsel %vm1594, %v1859, 0
        %1865 = vmatprep.subr.mxu0 0.0
        %1866 = vmatpush1.msra.mxu0 %v1861
        %1867 = vmatprep.subr.mxu0 0.0
        %1868 = vmatpush1.msra.mxu0 0.0
        %1869 = vmatprep.subr.mxu0 0.0
        %1870 = vmatpush1.msra.mxu0 0.0
        %1871 = vmatprep.subr.mxu0 0.0
        %1872 = vmatpush1.msra.mxu0 0.0
        %1873 = vmatprep.subr.mxu0 0.0
        %1874 = vmatpush1.msra.mxu0 0.0
        %1875 = vmatprep.subr.mxu0 0.0
        %1876 = vmatpush1.msra.mxu0 0.0
        %1877 = vmatprep.subr.mxu0 0.0
        %1878 = vmatpush1.msra.mxu0 0.0
        %1879 = vmatprep.subr.mxu0 0.0
        %1880 = vmatpush1.msra.mxu0 0.0
        %1881 = vmatprep.subr.mxu0 0.0
        %1882 = vmatpush1.msra.mxu0 0.0
        %1883 = vmatprep.subr.mxu0 0.0
        %1884 = vmatpush1.msra.mxu0 0.0
        %1885 = vmatprep.subr.mxu0 0.0
        %1886 = vmatpush1.msra.mxu0 0.0
        %1887 = vmatprep.subr.mxu0 0.0
        %1888 = vmatpush1.msra.mxu0 0.0
        %1889 = vmatprep.subr.mxu0 0.0
        %1890 = vmatpush1.msra.mxu0 0.0
        %1891 = vmatprep.subr.mxu0 0.0
        %1892 = vmatpush1.msra.mxu0 0.0
        %1893 = vmatprep.subr.mxu0 0.0
        %1894 = vmatpush1.msra.mxu0 0.0
        %1895 = vmatprep.subr.mxu0 0.0
        %1896 = vmatpush1.msra.mxu0 0.0
        %1897 = vmatprep.subr.mxu0 0.0
        %1898 = vmatpush1.msra.mxu0 0.0
        %1899 = vmatprep.subr.mxu0 0.0
        %1900 = vmatpush1.msra.mxu0 0.0
        %1901 = vmatprep.subr.mxu0 0.0
        %1902 = vmatpush1.msra.mxu0 0.0
        %1903 = vmatprep.subr.mxu0 0.0
        %1904 = vmatpush1.msra.mxu0 0.0
        %1905 = vmatprep.subr.mxu0 0.0
        %1906 = vmatpush1.msra.mxu0 0.0
        %1907 = vmatprep.subr.mxu0 0.0
        %1908 = vmatpush1.msra.mxu0 0.0
        %1909 = vmatprep.subr.mxu0 0.0
        %1910 = vmatpush1.msra.mxu0 0.0
        %1911 = vmatprep.subr.mxu0 0.0
        %1912 = vmatpush1.msra.mxu0 0.0
        %1913 = vmatprep.subr.mxu0 0.0
        %1914 = vmatpush1.msra.mxu0 0.0
        %1915 = vmatprep.subr.mxu0 0.0
        %1916 = vmatpush1.msra.mxu0 0.0
        %1917 = vmatprep.subr.mxu0 0.0
        %1918 = vmatpush1.msra.mxu0 0.0
        %1919 = vmatprep.subr.mxu0 0.0
        %1920 = vmatpush1.msra.mxu0 0.0
        %1921 = vmatprep.subr.mxu0 0.0
        %1922 = vmatpush1.msra.mxu0 0.0
        %1923 = vmatprep.subr.mxu0 0.0
        %1924 = vmatpush1.msra.mxu0 0.0
        %1925 = vmatprep.subr.mxu0 0.0
        %1926 = vmatpush1.msra.mxu0 0.0
        %1927 = vmatprep.subr.mxu0 0.0
        %1928 = vmatpush1.msra.mxu0 0.0
        %1929 = vmatprep.mubr.f32.mxu0 0.0
        %1930 = vmatmul.mubr.f32.gmra.mrb[0].mxu0 %v1863
        %v1931 = vpop.f32.mrb[0].mxu0
        %v1932 = vadd.f32 0.0, %v1931
        %v1933 = vpop.f32.mrb[0].mxu0
        %1934 = vdwg.mxu0
        %1936 = vrot.lane.b32.xlu0 %v1754, 8
        %v1937 = vpop.permute.xlu0 %1936
        %1940 = vrot.lane.b32.xlu0 %v1843, 16
        %v1941 = vpop.permute.xlu0 %1940
        %1944 = vrot.lane.b32.xlu0 %v1932, 24
        %v1945 = vpop.permute.xlu0 %1944
        %v1947 = vsel %vm1594, %v1664, %v1937
        %vm1948 = vcmask 130048
        %v1949 = vsel %vm1948, %v1947, %v1941
        %vm1950 = vcmask 195584
        %v1951 = vsel %vm1950, %v1949, %v1945
        %v1952 = vpack.c.bf16 %v1951, %v1951
        %v1953 = vld [vmem:[%s9] sm:$0xf]
        %v1954 = vld [vmem:[%s9 + $0x4] sm:$0xf]
        %v1955 = vld [vmem:[%s9 + $0x8] sm:$0xf]
        %v1956 = vld [vmem:[%s9 + $0xc] sm:$0xf]
        %v1957 = vld [vmem:[%s10] sm:$0x1]
        %v1959 = vlaneseq
        %v1960 = vshrl.u32 %v1959, 7
        %v1961 = vsub.s32 0, %v1960
        %v1962 = vrot.slane %v1957, %v1961
        %v1968 = vunpack.c.l.b16 %v1953
        %v1969 = vunpack.c.l.b16 %v1954
        %v1970 = vunpack.c.l.b16 %v1955
        %v1971 = vunpack.c.l.b16 %v1956
        %v1972 = vpack.c.b16 %v1969, %v1968
        %v1973 = vpack.c.b16 %v1971, %v1970
        %v1977 = vsel %vm645, %v1952, 0
        %1979 = vmatprep.subr.bf16.mxu0 0
        %1980 = vmatpush1.bf16.msra.mxu0 %v1972
        %1981 = vmatprep.subr.bf16.mxu0 0
        %1982 = vmatpush1.bf16.msra.mxu0 %v1973
        %1983 = vmatprep.subr.bf16.mxu0 0
        %1984 = vmatpush1.bf16.msra.mxu0 0
        %1985 = vmatprep.subr.bf16.mxu0 0
        %1986 = vmatpush1.bf16.msra.mxu0 0
        %1987 = vmatprep.subr.bf16.mxu0 0
        %1988 = vmatpush1.bf16.msra.mxu0 0
        %1989 = vmatprep.subr.bf16.mxu0 0
        %1990 = vmatpush1.bf16.msra.mxu0 0
        %1991 = vmatprep.subr.bf16.mxu0 0
        %1992 = vmatpush1.bf16.msra.mxu0 0
        %1993 = vmatprep.subr.bf16.mxu0 0
        %1994 = vmatpush1.bf16.msra.mxu0 0
        %1995 = vmatprep.subr.bf16.mxu0 0
        %1996 = vmatpush1.bf16.msra.mxu0 0
        %1997 = vmatprep.subr.bf16.mxu0 0
        %1998 = vmatpush1.bf16.msra.mxu0 0
        %1999 = vmatprep.subr.bf16.mxu0 0
        %2000 = vmatpush1.bf16.msra.mxu0 0
        %2001 = vmatprep.subr.bf16.mxu0 0
        %2002 = vmatpush1.bf16.msra.mxu0 0
        %2003 = vmatprep.subr.bf16.mxu0 0
        %2004 = vmatpush1.bf16.msra.mxu0 0
        %2005 = vmatprep.subr.bf16.mxu0 0
        %2006 = vmatpush1.bf16.msra.mxu0 0
        %2007 = vmatprep.subr.bf16.mxu0 0
        %2008 = vmatpush1.bf16.msra.mxu0 0
        %2009 = vmatprep.subr.bf16.mxu0 0
        %2010 = vmatpush1.bf16.msra.mxu0 0
        %2011 = vmatprep.mubr.bf16.mxu0 0
        %2012 = vmatmul.mubr.bf16.gmra.mrb[0].mxu0 %v1977
        %v2013 = vpop.f32.mrb[0].mxu0
        %v2014 = vadd.f32 %v1962, %v2013
        %v2015 = vpop.f32.mrb[0].mxu0
        %v2016 = vpop.f32.mrb[0].mxu0
        %v2017 = vpop.f32.mrb[0].mxu0
        %2018 = vdwg.mxu0
        %2019 = vst [vmem:[%s428] sm:$0xff] %v2014
        %s2020 = sand.u32 %s295, 1
        %s2021 = scalar_lea.sflag [#allocation5], %s2020
        %s2022 = sand.u32 %s295, 1
        %s2023 = smul.addr %s2022, 8
        %s2024 = scalar_lea.vmem [#allocation4], %s2023
        // Predicated region
        $region69: #{tpu_custom_call.1} parent=63 // pred_check
          %p2025 = pneg %p305
        $region70: #{tpu_custom_call.1} parent=63 // pred_check_branch
          %2027 = sbr.rel (%p2025) target = $region72
        $region71: #{tpu_custom_call.1} parent=63 // pred_region
          %s2029 = ssub.s32 128, 128
          %2030 = vsyncadd %s2021, %s2029
          %s2031 = sadd.s32 %s29, %s30
          %s2032 = smul.addr %s2031, 128
          %s2033 = scalar_lea.hbm %s11, %s2032
          %s2035 = sshll.u32 %s2024, 4
          %s2036 = int_to_ptr.vmem [resolvable:$true] %s2035
          %2038 = dma.vmem_to_hbm [thread:$0]  %s2036, 128, %s2033, %s2021
        $region72: #{tpu_custom_call.1} parent=63 // pred_fallthru
          _
      $region64: #{tpu_custom_call.1} parent=5 // pred_fallthru
        _
      %p2039 = scmp.le.s32.totalorder 2, %s20
      // Predicated region
      $region73: #{tpu_custom_call.1} parent=5 // pred_check
        %p2040 = pneg %p2039
      $region74: #{tpu_custom_call.1} parent=5 // pred_check_branch
        %2042 = sbr.rel (%p2040) target = $region76
      $region75: #{tpu_custom_call.1} parent=5 // pred_region
        %s2043 = ssub.s32 %s20, 2
        // Predicated region
        $region77: #{tpu_custom_call.1} parent=75 // pred_check
          %p2044 = pneg %p311
        $region78: #{tpu_custom_call.1} parent=75 // pred_check_branch
          %2046 = sbr.rel (%p2044) target = $region80
        $region79: #{tpu_custom_call.1} parent=75 // pred_region
          %s2047 = sand.u32 %s296, 1
          %s2048 = scalar_lea.sflag [#allocation5], %s2047
          %s2049 = sand.u32 %s296, 1
          %s2050 = smul.addr %s2049, 8
          %s2051 = scalar_lea.vmem [#allocation4], %s2050
          %2052 = dma.done %s2048, 128
        $region80: #{tpu_custom_call.1} parent=75 // pred_fallthru
          _
      $region76: #{tpu_custom_call.1} parent=5 // pred_fallthru
        _
    $region6: #{tpu_custom_call.1} parent=1 // loop_footer
      %s24 = sadd.s32 1, %s20
    $region7: #{tpu_custom_call.1} parent=1 // loop_footer_branch
      %19 = sbr.rel target = $region3
    $region8: #{tpu_custom_call.1} parent=1 // loop_exit
      _
    %2053 = vsyncpa [#allocation5], 1
    %s2054 = scalar_lea.sflag [#allocation5], 1
    %2055 = vsyncpa %s2054, 1

</llo_original>
